<compile_context>
chip_gen: v6e
topology: v6e:2x2x1
jax: 0.10.0
libtpu: 0.0.40
codegen_flags: <defaults>
</compile_context>

<pallas_src>
from functools import partial

import jax
import jax.numpy as jnp
from jax.experimental import pallas as pl
from jax.experimental.pallas import tpu as pltpu

N_LAYERS = 10
LANE = 128  # per-half output width (lane-dense); W_cat is 2*LANE columns wide


# ----------------------------- Pallas kernel --------------------------------


def _fused_gcn_sage_kernel(a1_ref, a2_ref, x_ref, wcat_ref, b_ref, o_ref):
    """All 10 SAGEConv layers statically unrolled; activations stay in VMEM/vregs.

    a1_ref, a2_ref : (N, N)            bf16 row-normalized adjacencies (mean aggr)
    x_ref          : (N, C_in)         f32 node features (C_in = real channel count)
    wcat_ref       : (L, C_in, 2*LANE) bf16 [Wl^T | Wr^T], output dims zero-padded to LANE
    b_ref          : (L, LANE)         f32 lin_l biases, zero-padded
    o_ref          : (N, LANE)         f32; valid channels live in the leading lanes
    """
    c_in = x_ref.shape[1]
    a1 = a1_ref[...]                      # bf16, kept in vregs across all layers
    a2 = a2_ref[...]
    cur = x_ref[...].astype(jnp.float32)  # f32 activations (bias/ReLU stay f32)

    for layer in range(N_LAYERS):
        # sage1_* layers use edge_index (a1), sage2_* layers use edge_idx_1_1 (a2).
        a = a1 if layer % 2 == 0 else a2
        # Only the first c_in lanes of cur are ever non-zero (weight/bias output
        # pads are zero and ReLU preserves zero), so contract over c_in only.
        cur_bf = cur[:, :c_in].astype(jnp.bfloat16)
        # Fused [Wl^T | Wr^T] matmul: one MXU push, (N, 2*LANE) f32 result.
        tmp = jnp.dot(cur_bf, wcat_ref[layer], preferred_element_type=jnp.float32)
        # Aggregated path A @ (x @ Wl^T); 0:LANE / LANE:2*LANE slices are
        # vreg-block aligned.
        neigh = jnp.dot(a, tmp[:, :LANE].astype(jnp.bfloat16),
                        preferred_element_type=jnp.float32)
        out = neigh + tmp[:, LANE:] + b_ref[layer][None, :]
        if layer < N_LAYERS - 1:          # F.relu after every layer except the last
            out = jnp.maximum(out, 0.0)
        cur = out

    o_ref[...] = cur.astype(o_ref.dtype)


def fused_gcn_sage(x, a1, a2, wcat, bias):
    """Single-invocation fused call: whole arrays resident in VMEM, no grid."""
    n = x.shape[0]
    vmem = pl.BlockSpec(memory_space=pltpu.MemorySpace.VMEM)
    return pl.pallas_call(
        _fused_gcn_sage_kernel,
        out_shape=jax.ShapeDtypeStruct((n, LANE), jnp.float32),
        in_specs=[vmem] * 5,
        out_specs=vmem,
    )(a1, a2, x, wcat, bias)


@partial(jax.jit, static_argnames=("out_channels",))
def gcn_layer_sage_forward(x, a1, a2, wcat, bias, out_channels):
    """Mirrors GCN_Layer_sage.forward; channel un-padding handled at the boundary."""
    out_pad = fused_gcn_sage(x, a1, a2, wcat, bias)
    return out_pad[:, :out_channels]


# ----------------------------- Glue / setup ----------------------------------


def edges_to_mean_adj(edge_index, num_nodes):
    """Dense row-normalized adjacency for mean aggregation (src -> dst), f32."""
    src, dst = edge_index[0], edge_index[1]
    a = jnp.zeros((num_nodes, num_nodes), jnp.float32).at[dst, src].add(1.0)
    deg = a.sum(axis=1, keepdims=True)
    return a / jnp.maximum(deg, 1.0)


def init_sage_params(key, in_channels, out_channels):
    """lin_l: weight + bias ; lin_r: weight, no bias (stored transposed (in, out))."""
    k1, k2, k3 = jax.random.split(key, 3)
    scale = 1.0 / jnp.sqrt(jnp.float32(in_channels))
    wl_t = jax.random.uniform(k1, (in_channels, out_channels), jnp.float32, -scale, scale)
    wr_t = jax.random.uniform(k2, (in_channels, out_channels), jnp.float32, -scale, scale)
    b = jax.random.uniform(k3, (1, out_channels), jnp.float32, -scale, scale)
    return wl_t, wr_t, b


def stack_fused_params(params, lane=LANE):
    """Host-side packing: W_cat[l] = [Wl^T | Wr^T] with each half's output dim
    zero-padded to `lane` columns (contraction dim left at in_channels, a
    multiple of the bf16 sublane tile), stacked over layers and cast to bf16.
    Biases are flattened and zero-padded to (L, lane) in f32. Zero pads keep
    padded output lanes exactly 0 through every layer."""
    wcat, bias = [], []
    for wl_t, wr_t, b in params:
        c_out = wl_t.shape[1]
        wl_p = jnp.pad(wl_t, ((0, 0), (0, lane - c_out)))
        wr_p = jnp.pad(wr_t, ((0, 0), (0, lane - c_out)))
        wcat.append(jnp.concatenate([wl_p, wr_p], axis=-1))
        bias.append(jnp.pad(b.reshape(-1), (0, lane - c_out)))
    return jnp.stack(wcat).astype(jnp.bfloat16), jnp.stack(bias).astype(jnp.float32)


def gcn_layer_sage_reference(x, a1, a2, params, mxu_dtype=jnp.float32):
    """Pure-JAX reference. mxu_dtype=f32 -> exact module semantics;
    mxu_dtype=bf16 -> mirrors the kernel's matmul-operand casts (f32 accumulation)."""
    n_layers = len(params)
    cur = x
    for i, (wl_t, wr_t, b) in enumerate(params):
        a = a1 if i % 2 == 0 else a2
        cur_m = cur.astype(mxu_dtype)
        neigh_in = jnp.dot(cur_m, wl_t.astype(mxu_dtype), preferred_element_type=jnp.float32)
        root = jnp.dot(cur_m, wr_t.astype(mxu_dtype), preferred_element_type=jnp.float32)
        neigh = jnp.dot(a.astype(mxu_dtype), neigh_in.astype(mxu_dtype),
                        preferred_element_type=jnp.float32)
        cur = neigh + root + b
        if i < n_layers - 1:
            cur = jnp.maximum(cur, 0.0)
    return cur


if __name__ == "__main__":
    key = jax.random.PRNGKey(0)

    num_nodes = 64
    in_channels = 32      # multiple of the bf16 sublane tile (16)
    out_channels = 16
    num_edges = 256

    k_x, k_e1, k_e2, k_p = jax.random.split(key, 4)

    # node features
    x = jax.random.normal(k_x, (num_nodes, in_channels), jnp.float32)

    # two edge sets: edge_index and edge_idx_1_1 (shape [2, E] of node ids)
    edge_index = jax.random.randint(k_e1, (2, num_edges), 0, num_nodes)
    edge_idx_1_1 = jax.random.randint(k_e2, (2, num_edges), 0, num_nodes)

    a1_f32 = edges_to_mean_adj(edge_index, num_nodes)
    a2_f32 = edges_to_mean_adj(edge_idx_1_1, num_nodes)
    a1 = a1_f32.astype(jnp.bfloat16)   # bf16 MXU operands for the kernel
    a2 = a2_f32.astype(jnp.bfloat16)

    # 10 SAGEConv layers: first 9 are (in -> in), last is (in -> out)
    layer_keys = jax.random.split(k_p, N_LAYERS)
    params = []
    for i in range(N_LAYERS):
        c_out = out_channels if i == N_LAYERS - 1 else in_channels
        params.append(init_sage_params(layer_keys[i], in_channels, c_out))
    wcat, bias = stack_fused_params(params)

    out = gcn_layer_sage_forward(x, a1, a2, wcat, bias, out_channels)
    out = jax.block_until_ready(out)

    assert out.shape == (num_nodes, out_channels)
    assert bool(jnp.all(jnp.isfinite(out)))

    # (1) implementation check: JAX reference applying the SAME bf16-at-matmul /
    #     f32-accumulate casts as the kernel -> should match tightly.
    ref_bf16 = gcn_layer_sage_reference(x, a1_f32, a2_f32, params, mxu_dtype=jnp.bfloat16)
    err_impl = float(jnp.max(jnp.abs(out - ref_bf16)))
    assert jnp.allclose(out, ref_bf16, rtol=1e-2, atol=1e-2), err_impl

    # (2) semantic check: full-f32 module semantics; looser tolerance for the
    #     bf16 MXU drift accumulated over the 10 chained layers.
    ref_f32 = gcn_layer_sage_reference(x, a1_f32, a2_f32, params, mxu_dtype=jnp.float32)
    err_sem = float(jnp.max(jnp.abs(out - ref_f32)))
    assert jnp.allclose(out, ref_f32, rtol=5e-2, atol=5e-2), err_sem

    print("KERNEL_OK")
</pallas_src>

<mosaic_0001>
module attributes {stable_mosaic.version = 11 : i64} {
  func.func @_fused_gcn_sage_kernel(%arg0: memref<64x64xbf16, #tpu.memory_space<vmem>>, %arg1: memref<64x64xbf16, #tpu.memory_space<vmem>>, %arg2: memref<64x32xf32, #tpu.memory_space<vmem>>, %arg3: memref<10x32x256xbf16, #tpu.memory_space<vmem>>, %arg4: memref<10x128xf32, #tpu.memory_space<vmem>>, %arg5: memref<64x128xf32, #tpu.memory_space<vmem>>) attributes {dimension_semantics = [], scalar_prefetch = 0 : i64, scratch_operands = 0 : i64, tpu.core_type = #tpu.core_type<tc>} {
    %c0 = arith.constant 0 : index
    %c0_0 = arith.constant 0 : index
    %0 = vector.load %arg0[%c0, %c0_0] : memref<64x64xbf16, #tpu.memory_space<vmem>>, vector<64x64xbf16>
    %c0_1 = arith.constant 0 : index
    %c0_2 = arith.constant 0 : index
    %1 = vector.load %arg1[%c0_1, %c0_2] : memref<64x64xbf16, #tpu.memory_space<vmem>>, vector<64x64xbf16>
    %c0_3 = arith.constant 0 : index
    %c0_4 = arith.constant 0 : index
    %2 = vector.load %arg2[%c0_3, %c0_4] : memref<64x32xf32, #tpu.memory_space<vmem>>, vector<64x32xf32>
    %3 = arith.truncf %2 : vector<64x32xf32> to vector<64x32xbf16>
    %c0_5 = arith.constant 0 : index
    %c0_6 = arith.constant 0 : index
    %c0_7 = arith.constant 0 : index
    %4 = vector.load %arg3[%c0_5, %c0_6, %c0_7] : memref<10x32x256xbf16, #tpu.memory_space<vmem>>, vector<1x32x256xbf16>
    %5 = vector.shape_cast %4 : vector<1x32x256xbf16> to vector<32x256xbf16>
    %cst = arith.constant dense<0.000000e+00> : vector<64x256xf32>
    %6 = tpu.matmul %3, %5, %cst {dimension_numbers = #tpu.dot_dimension_numbers<[1], [0], [0], [1], [0, 0, 1, 1], [], []>} : vector<64x32xbf16>, vector<32x256xbf16>, vector<64x256xf32> -> vector<64x256xf32>
    %7 = vector.extract_strided_slice %6 {offsets = [0, 0], sizes = [64, 128], strides = [1, 1]} : vector<64x256xf32> to vector<64x128xf32>
    %8 = arith.truncf %7 : vector<64x128xf32> to vector<64x128xbf16>
    %cst_8 = arith.constant dense<0.000000e+00> : vector<64x128xf32>
    %9 = tpu.matmul %0, %8, %cst_8 {dimension_numbers = #tpu.dot_dimension_numbers<[1], [0], [0], [1], [0, 0, 1, 1], [], []>} : vector<64x64xbf16>, vector<64x128xbf16>, vector<64x128xf32> -> vector<64x128xf32>
    %10 = vector.extract_strided_slice %6 {offsets = [0, 128], sizes = [64, 128], strides = [1, 1]} : vector<64x256xf32> to vector<64x128xf32>
    %11 = arith.addf %9, %10 : vector<64x128xf32>
    %c0_9 = arith.constant 0 : index
    %c0_10 = arith.constant 0 : index
    %12 = vector.load %arg4[%c0_9, %c0_10] : memref<10x128xf32, #tpu.memory_space<vmem>>, vector<1x128xf32>
    %13 = vector.shape_cast %12 : vector<1x128xf32> to vector<128xf32>
    %14 = vector.shape_cast %13 : vector<128xf32> to vector<1x128xf32>
    %15 = vector.broadcast %14 : vector<1x128xf32> to vector<64x128xf32>
    %16 = arith.addf %11, %15 : vector<64x128xf32>
    %cst_11 = arith.constant 0.000000e+00 : f32
    %17 = vector.broadcast %cst_11 : f32 to vector<64x128xf32>
    %18 = arith.maximumf %16, %17 : vector<64x128xf32>
    %19 = vector.extract_strided_slice %18 {offsets = [0, 0], sizes = [64, 32], strides = [1, 1]} : vector<64x128xf32> to vector<64x32xf32>
    %20 = arith.truncf %19 : vector<64x32xf32> to vector<64x32xbf16>
    %c1 = arith.constant 1 : index
    %c0_12 = arith.constant 0 : index
    %c0_13 = arith.constant 0 : index
    %21 = vector.load %arg3[%c1, %c0_12, %c0_13] : memref<10x32x256xbf16, #tpu.memory_space<vmem>>, vector<1x32x256xbf16>
    %22 = vector.shape_cast %21 : vector<1x32x256xbf16> to vector<32x256xbf16>
    %cst_14 = arith.constant dense<0.000000e+00> : vector<64x256xf32>
    %23 = tpu.matmul %20, %22, %cst_14 {dimension_numbers = #tpu.dot_dimension_numbers<[1], [0], [0], [1], [0, 0, 1, 1], [], []>} : vector<64x32xbf16>, vector<32x256xbf16>, vector<64x256xf32> -> vector<64x256xf32>
    %24 = vector.extract_strided_slice %23 {offsets = [0, 0], sizes = [64, 128], strides = [1, 1]} : vector<64x256xf32> to vector<64x128xf32>
    %25 = arith.truncf %24 : vector<64x128xf32> to vector<64x128xbf16>
    %cst_15 = arith.constant dense<0.000000e+00> : vector<64x128xf32>
    %26 = tpu.matmul %1, %25, %cst_15 {dimension_numbers = #tpu.dot_dimension_numbers<[1], [0], [0], [1], [0, 0, 1, 1], [], []>} : vector<64x64xbf16>, vector<64x128xbf16>, vector<64x128xf32> -> vector<64x128xf32>
    %27 = vector.extract_strided_slice %23 {offsets = [0, 128], sizes = [64, 128], strides = [1, 1]} : vector<64x256xf32> to vector<64x128xf32>
    %28 = arith.addf %26, %27 : vector<64x128xf32>
    %c1_16 = arith.constant 1 : index
    %c0_17 = arith.constant 0 : index
    %29 = vector.load %arg4[%c1_16, %c0_17] : memref<10x128xf32, #tpu.memory_space<vmem>>, vector<1x128xf32>
    %30 = vector.shape_cast %29 : vector<1x128xf32> to vector<128xf32>
    %31 = vector.shape_cast %30 : vector<128xf32> to vector<1x128xf32>
    %32 = vector.broadcast %31 : vector<1x128xf32> to vector<64x128xf32>
    %33 = arith.addf %28, %32 : vector<64x128xf32>
    %cst_18 = arith.constant 0.000000e+00 : f32
    %34 = vector.broadcast %cst_18 : f32 to vector<64x128xf32>
    %35 = arith.maximumf %33, %34 : vector<64x128xf32>
    %36 = vector.extract_strided_slice %35 {offsets = [0, 0], sizes = [64, 32], strides = [1, 1]} : vector<64x128xf32> to vector<64x32xf32>
    %37 = arith.truncf %36 : vector<64x32xf32> to vector<64x32xbf16>
    %c2 = arith.constant 2 : index
    %c0_19 = arith.constant 0 : index
    %c0_20 = arith.constant 0 : index
    %38 = vector.load %arg3[%c2, %c0_19, %c0_20] : memref<10x32x256xbf16, #tpu.memory_space<vmem>>, vector<1x32x256xbf16>
    %39 = vector.shape_cast %38 : vector<1x32x256xbf16> to vector<32x256xbf16>
    %cst_21 = arith.constant dense<0.000000e+00> : vector<64x256xf32>
    %40 = tpu.matmul %37, %39, %cst_21 {dimension_numbers = #tpu.dot_dimension_numbers<[1], [0], [0], [1], [0, 0, 1, 1], [], []>} : vector<64x32xbf16>, vector<32x256xbf16>, vector<64x256xf32> -> vector<64x256xf32>
    %41 = vector.extract_strided_slice %40 {offsets = [0, 0], sizes = [64, 128], strides = [1, 1]} : vector<64x256xf32> to vector<64x128xf32>
    %42 = arith.truncf %41 : vector<64x128xf32> to vector<64x128xbf16>
    %cst_22 = arith.constant dense<0.000000e+00> : vector<64x128xf32>
    %43 = tpu.matmul %0, %42, %cst_22 {dimension_numbers = #tpu.dot_dimension_numbers<[1], [0], [0], [1], [0, 0, 1, 1], [], []>} : vector<64x64xbf16>, vector<64x128xbf16>, vector<64x128xf32> -> vector<64x128xf32>
    %44 = vector.extract_strided_slice %40 {offsets = [0, 128], sizes = [64, 128], strides = [1, 1]} : vector<64x256xf32> to vector<64x128xf32>
    %45 = arith.addf %43, %44 : vector<64x128xf32>
    %c2_23 = arith.constant 2 : index
    %c0_24 = arith.constant 0 : index
    %46 = vector.load %arg4[%c2_23, %c0_24] : memref<10x128xf32, #tpu.memory_space<vmem>>, vector<1x128xf32>
    %47 = vector.shape_cast %46 : vector<1x128xf32> to vector<128xf32>
    %48 = vector.shape_cast %47 : vector<128xf32> to vector<1x128xf32>
    %49 = vector.broadcast %48 : vector<1x128xf32> to vector<64x128xf32>
    %50 = arith.addf %45, %49 : vector<64x128xf32>
    %cst_25 = arith.constant 0.000000e+00 : f32
    %51 = vector.broadcast %cst_25 : f32 to vector<64x128xf32>
    %52 = arith.maximumf %50, %51 : vector<64x128xf32>
    %53 = vector.extract_strided_slice %52 {offsets = [0, 0], sizes = [64, 32], strides = [1, 1]} : vector<64x128xf32> to vector<64x32xf32>
    %54 = arith.truncf %53 : vector<64x32xf32> to vector<64x32xbf16>
    %c3 = arith.constant 3 : index
    %c0_26 = arith.constant 0 : index
    %c0_27 = arith.constant 0 : index
    %55 = vector.load %arg3[%c3, %c0_26, %c0_27] : memref<10x32x256xbf16, #tpu.memory_space<vmem>>, vector<1x32x256xbf16>
    %56 = vector.shape_cast %55 : vector<1x32x256xbf16> to vector<32x256xbf16>
    %cst_28 = arith.constant dense<0.000000e+00> : vector<64x256xf32>
    %57 = tpu.matmul %54, %56, %cst_28 {dimension_numbers = #tpu.dot_dimension_numbers<[1], [0], [0], [1], [0, 0, 1, 1], [], []>} : vector<64x32xbf16>, vector<32x256xbf16>, vector<64x256xf32> -> vector<64x256xf32>
    %58 = vector.extract_strided_slice %57 {offsets = [0, 0], sizes = [64, 128], strides = [1, 1]} : vector<64x256xf32> to vector<64x128xf32>
    %59 = arith.truncf %58 : vector<64x128xf32> to vector<64x128xbf16>
    %cst_29 = arith.constant dense<0.000000e+00> : vector<64x128xf32>
    %60 = tpu.matmul %1, %59, %cst_29 {dimension_numbers = #tpu.dot_dimension_numbers<[1], [0], [0], [1], [0, 0, 1, 1], [], []>} : vector<64x64xbf16>, vector<64x128xbf16>, vector<64x128xf32> -> vector<64x128xf32>
    %61 = vector.extract_strided_slice %57 {offsets = [0, 128], sizes = [64, 128], strides = [1, 1]} : vector<64x256xf32> to vector<64x128xf32>
    %62 = arith.addf %60, %61 : vector<64x128xf32>
    %c3_30 = arith.constant 3 : index
    %c0_31 = arith.constant 0 : index
    %63 = vector.load %arg4[%c3_30, %c0_31] : memref<10x128xf32, #tpu.memory_space<vmem>>, vector<1x128xf32>
    %64 = vector.shape_cast %63 : vector<1x128xf32> to vector<128xf32>
    %65 = vector.shape_cast %64 : vector<128xf32> to vector<1x128xf32>
    %66 = vector.broadcast %65 : vector<1x128xf32> to vector<64x128xf32>
    %67 = arith.addf %62, %66 : vector<64x128xf32>
    %cst_32 = arith.constant 0.000000e+00 : f32
    %68 = vector.broadcast %cst_32 : f32 to vector<64x128xf32>
    %69 = arith.maximumf %67, %68 : vector<64x128xf32>
    %70 = vector.extract_strided_slice %69 {offsets = [0, 0], sizes = [64, 32], strides = [1, 1]} : vector<64x128xf32> to vector<64x32xf32>
    %71 = arith.truncf %70 : vector<64x32xf32> to vector<64x32xbf16>
    %c4 = arith.constant 4 : index
    %c0_33 = arith.constant 0 : index
    %c0_34 = arith.constant 0 : index
    %72 = vector.load %arg3[%c4, %c0_33, %c0_34] : memref<10x32x256xbf16, #tpu.memory_space<vmem>>, vector<1x32x256xbf16>
    %73 = vector.shape_cast %72 : vector<1x32x256xbf16> to vector<32x256xbf16>
    %cst_35 = arith.constant dense<0.000000e+00> : vector<64x256xf32>
    %74 = tpu.matmul %71, %73, %cst_35 {dimension_numbers = #tpu.dot_dimension_numbers<[1], [0], [0], [1], [0, 0, 1, 1], [], []>} : vector<64x32xbf16>, vector<32x256xbf16>, vector<64x256xf32> -> vector<64x256xf32>
    %75 = vector.extract_strided_slice %74 {offsets = [0, 0], sizes = [64, 128], strides = [1, 1]} : vector<64x256xf32> to vector<64x128xf32>
    %76 = arith.truncf %75 : vector<64x128xf32> to vector<64x128xbf16>
    %cst_36 = arith.constant dense<0.000000e+00> : vector<64x128xf32>
    %77 = tpu.matmul %0, %76, %cst_36 {dimension_numbers = #tpu.dot_dimension_numbers<[1], [0], [0], [1], [0, 0, 1, 1], [], []>} : vector<64x64xbf16>, vector<64x128xbf16>, vector<64x128xf32> -> vector<64x128xf32>
    %78 = vector.extract_strided_slice %74 {offsets = [0, 128], sizes = [64, 128], strides = [1, 1]} : vector<64x256xf32> to vector<64x128xf32>
    %79 = arith.addf %77, %78 : vector<64x128xf32>
    %c4_37 = arith.constant 4 : index
    %c0_38 = arith.constant 0 : index
    %80 = vector.load %arg4[%c4_37, %c0_38] : memref<10x128xf32, #tpu.memory_space<vmem>>, vector<1x128xf32>
    %81 = vector.shape_cast %80 : vector<1x128xf32> to vector<128xf32>
    %82 = vector.shape_cast %81 : vector<128xf32> to vector<1x128xf32>
    %83 = vector.broadcast %82 : vector<1x128xf32> to vector<64x128xf32>
    %84 = arith.addf %79, %83 : vector<64x128xf32>
    %cst_39 = arith.constant 0.000000e+00 : f32
    %85 = vector.broadcast %cst_39 : f32 to vector<64x128xf32>
    %86 = arith.maximumf %84, %85 : vector<64x128xf32>
    %87 = vector.extract_strided_slice %86 {offsets = [0, 0], sizes = [64, 32], strides = [1, 1]} : vector<64x128xf32> to vector<64x32xf32>
    %88 = arith.truncf %87 : vector<64x32xf32> to vector<64x32xbf16>
    %c5 = arith.constant 5 : index
    %c0_40 = arith.constant 0 : index
    %c0_41 = arith.constant 0 : index
    %89 = vector.load %arg3[%c5, %c0_40, %c0_41] : memref<10x32x256xbf16, #tpu.memory_space<vmem>>, vector<1x32x256xbf16>
    %90 = vector.shape_cast %89 : vector<1x32x256xbf16> to vector<32x256xbf16>
    %cst_42 = arith.constant dense<0.000000e+00> : vector<64x256xf32>
    %91 = tpu.matmul %88, %90, %cst_42 {dimension_numbers = #tpu.dot_dimension_numbers<[1], [0], [0], [1], [0, 0, 1, 1], [], []>} : vector<64x32xbf16>, vector<32x256xbf16>, vector<64x256xf32> -> vector<64x256xf32>
    %92 = vector.extract_strided_slice %91 {offsets = [0, 0], sizes = [64, 128], strides = [1, 1]} : vector<64x256xf32> to vector<64x128xf32>
    %93 = arith.truncf %92 : vector<64x128xf32> to vector<64x128xbf16>
    %cst_43 = arith.constant dense<0.000000e+00> : vector<64x128xf32>
    %94 = tpu.matmul %1, %93, %cst_43 {dimension_numbers = #tpu.dot_dimension_numbers<[1], [0], [0], [1], [0, 0, 1, 1], [], []>} : vector<64x64xbf16>, vector<64x128xbf16>, vector<64x128xf32> -> vector<64x128xf32>
    %95 = vector.extract_strided_slice %91 {offsets = [0, 128], sizes = [64, 128], strides = [1, 1]} : vector<64x256xf32> to vector<64x128xf32>
    %96 = arith.addf %94, %95 : vector<64x128xf32>
    %c5_44 = arith.constant 5 : index
    %c0_45 = arith.constant 0 : index
    %97 = vector.load %arg4[%c5_44, %c0_45] : memref<10x128xf32, #tpu.memory_space<vmem>>, vector<1x128xf32>
    %98 = vector.shape_cast %97 : vector<1x128xf32> to vector<128xf32>
    %99 = vector.shape_cast %98 : vector<128xf32> to vector<1x128xf32>
    %100 = vector.broadcast %99 : vector<1x128xf32> to vector<64x128xf32>
    %101 = arith.addf %96, %100 : vector<64x128xf32>
    %cst_46 = arith.constant 0.000000e+00 : f32
    %102 = vector.broadcast %cst_46 : f32 to vector<64x128xf32>
    %103 = arith.maximumf %101, %102 : vector<64x128xf32>
    %104 = vector.extract_strided_slice %103 {offsets = [0, 0], sizes = [64, 32], strides = [1, 1]} : vector<64x128xf32> to vector<64x32xf32>
    %105 = arith.truncf %104 : vector<64x32xf32> to vector<64x32xbf16>
    %c6 = arith.constant 6 : index
    %c0_47 = arith.constant 0 : index
    %c0_48 = arith.constant 0 : index
    %106 = vector.load %arg3[%c6, %c0_47, %c0_48] : memref<10x32x256xbf16, #tpu.memory_space<vmem>>, vector<1x32x256xbf16>
    %107 = vector.shape_cast %106 : vector<1x32x256xbf16> to vector<32x256xbf16>
    %cst_49 = arith.constant dense<0.000000e+00> : vector<64x256xf32>
    %108 = tpu.matmul %105, %107, %cst_49 {dimension_numbers = #tpu.dot_dimension_numbers<[1], [0], [0], [1], [0, 0, 1, 1], [], []>} : vector<64x32xbf16>, vector<32x256xbf16>, vector<64x256xf32> -> vector<64x256xf32>
    %109 = vector.extract_strided_slice %108 {offsets = [0, 0], sizes = [64, 128], strides = [1, 1]} : vector<64x256xf32> to vector<64x128xf32>
    %110 = arith.truncf %109 : vector<64x128xf32> to vector<64x128xbf16>
    %cst_50 = arith.constant dense<0.000000e+00> : vector<64x128xf32>
    %111 = tpu.matmul %0, %110, %cst_50 {dimension_numbers = #tpu.dot_dimension_numbers<[1], [0], [0], [1], [0, 0, 1, 1], [], []>} : vector<64x64xbf16>, vector<64x128xbf16>, vector<64x128xf32> -> vector<64x128xf32>
    %112 = vector.extract_strided_slice %108 {offsets = [0, 128], sizes = [64, 128], strides = [1, 1]} : vector<64x256xf32> to vector<64x128xf32>
    %113 = arith.addf %111, %112 : vector<64x128xf32>
    %c6_51 = arith.constant 6 : index
    %c0_52 = arith.constant 0 : index
    %114 = vector.load %arg4[%c6_51, %c0_52] : memref<10x128xf32, #tpu.memory_space<vmem>>, vector<1x128xf32>
    %115 = vector.shape_cast %114 : vector<1x128xf32> to vector<128xf32>
    %116 = vector.shape_cast %115 : vector<128xf32> to vector<1x128xf32>
    %117 = vector.broadcast %116 : vector<1x128xf32> to vector<64x128xf32>
    %118 = arith.addf %113, %117 : vector<64x128xf32>
    %cst_53 = arith.constant 0.000000e+00 : f32
    %119 = vector.broadcast %cst_53 : f32 to vector<64x128xf32>
    %120 = arith.maximumf %118, %119 : vector<64x128xf32>
    %121 = vector.extract_strided_slice %120 {offsets = [0, 0], sizes = [64, 32], strides = [1, 1]} : vector<64x128xf32> to vector<64x32xf32>
    %122 = arith.truncf %121 : vector<64x32xf32> to vector<64x32xbf16>
    %c7 = arith.constant 7 : index
    %c0_54 = arith.constant 0 : index
    %c0_55 = arith.constant 0 : index
    %123 = vector.load %arg3[%c7, %c0_54, %c0_55] : memref<10x32x256xbf16, #tpu.memory_space<vmem>>, vector<1x32x256xbf16>
    %124 = vector.shape_cast %123 : vector<1x32x256xbf16> to vector<32x256xbf16>
    %cst_56 = arith.constant dense<0.000000e+00> : vector<64x256xf32>
    %125 = tpu.matmul %122, %124, %cst_56 {dimension_numbers = #tpu.dot_dimension_numbers<[1], [0], [0], [1], [0, 0, 1, 1], [], []>} : vector<64x32xbf16>, vector<32x256xbf16>, vector<64x256xf32> -> vector<64x256xf32>
    %126 = vector.extract_strided_slice %125 {offsets = [0, 0], sizes = [64, 128], strides = [1, 1]} : vector<64x256xf32> to vector<64x128xf32>
    %127 = arith.truncf %126 : vector<64x128xf32> to vector<64x128xbf16>
    %cst_57 = arith.constant dense<0.000000e+00> : vector<64x128xf32>
    %128 = tpu.matmul %1, %127, %cst_57 {dimension_numbers = #tpu.dot_dimension_numbers<[1], [0], [0], [1], [0, 0, 1, 1], [], []>} : vector<64x64xbf16>, vector<64x128xbf16>, vector<64x128xf32> -> vector<64x128xf32>
    %129 = vector.extract_strided_slice %125 {offsets = [0, 128], sizes = [64, 128], strides = [1, 1]} : vector<64x256xf32> to vector<64x128xf32>
    %130 = arith.addf %128, %129 : vector<64x128xf32>
    %c7_58 = arith.constant 7 : index
    %c0_59 = arith.constant 0 : index
    %131 = vector.load %arg4[%c7_58, %c0_59] : memref<10x128xf32, #tpu.memory_space<vmem>>, vector<1x128xf32>
    %132 = vector.shape_cast %131 : vector<1x128xf32> to vector<128xf32>
    %133 = vector.shape_cast %132 : vector<128xf32> to vector<1x128xf32>
    %134 = vector.broadcast %133 : vector<1x128xf32> to vector<64x128xf32>
    %135 = arith.addf %130, %134 : vector<64x128xf32>
    %cst_60 = arith.constant 0.000000e+00 : f32
    %136 = vector.broadcast %cst_60 : f32 to vector<64x128xf32>
    %137 = arith.maximumf %135, %136 : vector<64x128xf32>
    %138 = vector.extract_strided_slice %137 {offsets = [0, 0], sizes = [64, 32], strides = [1, 1]} : vector<64x128xf32> to vector<64x32xf32>
    %139 = arith.truncf %138 : vector<64x32xf32> to vector<64x32xbf16>
    %c8 = arith.constant 8 : index
    %c0_61 = arith.constant 0 : index
    %c0_62 = arith.constant 0 : index
    %140 = vector.load %arg3[%c8, %c0_61, %c0_62] : memref<10x32x256xbf16, #tpu.memory_space<vmem>>, vector<1x32x256xbf16>
    %141 = vector.shape_cast %140 : vector<1x32x256xbf16> to vector<32x256xbf16>
    %cst_63 = arith.constant dense<0.000000e+00> : vector<64x256xf32>
    %142 = tpu.matmul %139, %141, %cst_63 {dimension_numbers = #tpu.dot_dimension_numbers<[1], [0], [0], [1], [0, 0, 1, 1], [], []>} : vector<64x32xbf16>, vector<32x256xbf16>, vector<64x256xf32> -> vector<64x256xf32>
    %143 = vector.extract_strided_slice %142 {offsets = [0, 0], sizes = [64, 128], strides = [1, 1]} : vector<64x256xf32> to vector<64x128xf32>
    %144 = arith.truncf %143 : vector<64x128xf32> to vector<64x128xbf16>
    %cst_64 = arith.constant dense<0.000000e+00> : vector<64x128xf32>
    %145 = tpu.matmul %0, %144, %cst_64 {dimension_numbers = #tpu.dot_dimension_numbers<[1], [0], [0], [1], [0, 0, 1, 1], [], []>} : vector<64x64xbf16>, vector<64x128xbf16>, vector<64x128xf32> -> vector<64x128xf32>
    %146 = vector.extract_strided_slice %142 {offsets = [0, 128], sizes = [64, 128], strides = [1, 1]} : vector<64x256xf32> to vector<64x128xf32>
    %147 = arith.addf %145, %146 : vector<64x128xf32>
    %c8_65 = arith.constant 8 : index
    %c0_66 = arith.constant 0 : index
    %148 = vector.load %arg4[%c8_65, %c0_66] : memref<10x128xf32, #tpu.memory_space<vmem>>, vector<1x128xf32>
    %149 = vector.shape_cast %148 : vector<1x128xf32> to vector<128xf32>
    %150 = vector.shape_cast %149 : vector<128xf32> to vector<1x128xf32>
    %151 = vector.broadcast %150 : vector<1x128xf32> to vector<64x128xf32>
    %152 = arith.addf %147, %151 : vector<64x128xf32>
    %cst_67 = arith.constant 0.000000e+00 : f32
    %153 = vector.broadcast %cst_67 : f32 to vector<64x128xf32>
    %154 = arith.maximumf %152, %153 : vector<64x128xf32>
    %155 = vector.extract_strided_slice %154 {offsets = [0, 0], sizes = [64, 32], strides = [1, 1]} : vector<64x128xf32> to vector<64x32xf32>
    %156 = arith.truncf %155 : vector<64x32xf32> to vector<64x32xbf16>
    %c9 = arith.constant 9 : index
    %c0_68 = arith.constant 0 : index
    %c0_69 = arith.constant 0 : index
    %157 = vector.load %arg3[%c9, %c0_68, %c0_69] : memref<10x32x256xbf16, #tpu.memory_space<vmem>>, vector<1x32x256xbf16>
    %158 = vector.shape_cast %157 : vector<1x32x256xbf16> to vector<32x256xbf16>
    %cst_70 = arith.constant dense<0.000000e+00> : vector<64x256xf32>
    %159 = tpu.matmul %156, %158, %cst_70 {dimension_numbers = #tpu.dot_dimension_numbers<[1], [0], [0], [1], [0, 0, 1, 1], [], []>} : vector<64x32xbf16>, vector<32x256xbf16>, vector<64x256xf32> -> vector<64x256xf32>
    %160 = vector.extract_strided_slice %159 {offsets = [0, 0], sizes = [64, 128], strides = [1, 1]} : vector<64x256xf32> to vector<64x128xf32>
    %161 = arith.truncf %160 : vector<64x128xf32> to vector<64x128xbf16>
    %cst_71 = arith.constant dense<0.000000e+00> : vector<64x128xf32>
    %162 = tpu.matmul %1, %161, %cst_71 {dimension_numbers = #tpu.dot_dimension_numbers<[1], [0], [0], [1], [0, 0, 1, 1], [], []>} : vector<64x64xbf16>, vector<64x128xbf16>, vector<64x128xf32> -> vector<64x128xf32>
    %163 = vector.extract_strided_slice %159 {offsets = [0, 128], sizes = [64, 128], strides = [1, 1]} : vector<64x256xf32> to vector<64x128xf32>
    %164 = arith.addf %162, %163 : vector<64x128xf32>
    %c9_72 = arith.constant 9 : index
    %c0_73 = arith.constant 0 : index
    %165 = vector.load %arg4[%c9_72, %c0_73] : memref<10x128xf32, #tpu.memory_space<vmem>>, vector<1x128xf32>
    %166 = vector.shape_cast %165 : vector<1x128xf32> to vector<128xf32>
    %167 = vector.shape_cast %166 : vector<128xf32> to vector<1x128xf32>
    %168 = vector.broadcast %167 : vector<1x128xf32> to vector<64x128xf32>
    %169 = arith.addf %164, %168 : vector<64x128xf32>
    %c0_74 = arith.constant 0 : index
    %c0_75 = arith.constant 0 : index
    %170 = vector.load %arg5[%c0_74, %c0_75] : memref<64x128xf32, #tpu.memory_space<vmem>>, vector<64x128xf32>
    tpu.vector_store %arg5[%c0_74, %c0_75], %169 {strides = array<i32>} : memref<64x128xf32, #tpu.memory_space<vmem>>, vector<64x128xf32>,
    return
  }
}

</mosaic_0001>

<llo_original>
// kernel: gcn_layer_sage_forward.1
$region0: #{gcn_layer_sage_forward.1}
  #allocation0 [shape = 'u32[]', space=smem, size = 0x4, offset = 0x4, fixed_abs, tag = 'smem constant byte address 0x4 - core index']
  #allocation1 [shape = 'u32[144,128]{1,0:T(1,128)}', space=vmem, size = 0x12000, scoped, tag = 'internal scratch']
  %s0 = inlined_call_operand.vmem [shape: bf16[64,64], index: 0, kind: input, shape index: {}]
  %s1 = inlined_call_operand.vmem [shape: bf16[64,64], index: 1, kind: input, shape index: {}]
  %s2 = inlined_call_operand.vmem [shape: f32[64,32], index: 2, kind: input, shape index: {}]
  %s3 = inlined_call_operand.hbm [shape: bf16[10,32,256], index: 3, kind: input, shape index: {}]
  %s4 = inlined_call_operand.vmem [shape: f32[10,128], index: 4, kind: input, shape index: {}]
  %s5 = inlined_call_operand.vmem [shape: f32[64,128], index: 5, kind: output, shape index: {}]
  %s6 = sld [smem:[#allocation0]]
  $region34: #{gcn_layer_sage_forward.1} parent=0
    _
  %s8 = ssub.s32 1, %s6
  %s9 = scalar_select 0, %s8, %s6
  $region1: #{gcn_layer_sage_forward.1} parent=0
    #allocation2 [shape = 'u8[163840]{0}', space=vmem, size = 0x28000, scoped, tag = 'input window, operand 3, single buffered']
    #allocation3 [shape = 's32[1]{0}', space=sflag, size = 0x4, scoped, tag = 'scoped memory for gcn_layer_sage_forward.1']
    %10 = vsyncpa [#allocation3], 0
    // Predicated region
    $region2: #{gcn_layer_sage_forward.1} parent=1 // pred_check
      _
    $region3: #{gcn_layer_sage_forward.1} parent=1 // pred_check_branch
      %12 = sbr.rel (0) target = $region5
    $region4: #{gcn_layer_sage_forward.1} parent=1 // pred_region
      _
    $region5: #{gcn_layer_sage_forward.1} parent=1 // pred_fallthru
      _
    // Predicated region
    $region6: #{gcn_layer_sage_forward.1} parent=1 // pred_check
      _
    $region7: #{gcn_layer_sage_forward.1} parent=1 // pred_check_branch
      %14 = sbr.rel (0) target = $region9
    $region8: #{gcn_layer_sage_forward.1} parent=1 // pred_region
      _
    $region9: #{gcn_layer_sage_forward.1} parent=1 // pred_fallthru
      _
    // Predicated region
    $region10: #{gcn_layer_sage_forward.1} parent=1 // pred_check
      _
    $region11: #{gcn_layer_sage_forward.1} parent=1 // pred_check_branch
      %16 = sbr.rel (0) target = $region13
    $region12: #{gcn_layer_sage_forward.1} parent=1 // pred_region
      _
    $region13: #{gcn_layer_sage_forward.1} parent=1 // pred_fallthru
      _
    // Predicated region
    $region14: #{gcn_layer_sage_forward.1} parent=1 // pred_check
      _
    $region15: #{gcn_layer_sage_forward.1} parent=1 // pred_check_branch
      %18 = sbr.rel (0) target = $region17
    $region16: #{gcn_layer_sage_forward.1} parent=1 // pred_region
      %s20 = ssub.s32 5120, 5120
      %21 = vsyncadd [#allocation3], %s20
      %s22 = sshll.u32 [#allocation2], 4
      %s23 = int_to_ptr.vmem [resolvable:$true] %s22
      %28 = dma.hbm_to_vmem [thread:$0]  %s3, 5120, %s23, [#allocation3], 128, 128, 8
    $region17: #{gcn_layer_sage_forward.1} parent=1 // pred_fallthru
      _
    // Predicated region
    $region18: #{gcn_layer_sage_forward.1} parent=1 // pred_check
      _
    $region19: #{gcn_layer_sage_forward.1} parent=1 // pred_check_branch
      %30 = sbr.rel (0) target = $region21
    $region20: #{gcn_layer_sage_forward.1} parent=1 // pred_region
      _
    $region21: #{gcn_layer_sage_forward.1} parent=1 // pred_fallthru
      _
    // Predicated region
    $region22: #{gcn_layer_sage_forward.1} parent=1 // pred_check
      _
    $region23: #{gcn_layer_sage_forward.1} parent=1 // pred_check_branch
      %32 = sbr.rel (0) target = $region25
    $region24: #{gcn_layer_sage_forward.1} parent=1 // pred_region
      %33 = dma.done [#allocation3], 5120
    $region25: #{gcn_layer_sage_forward.1} parent=1 // pred_fallthru
      _
    %v35 = vld [vmem:[%s0] sm:$0xf]
    %v36 = vld [vmem:[%s0 + $0x4] sm:$0xf]
    %v37 = vld [vmem:[%s0 + $0x8] sm:$0xf]
    %v38 = vld [vmem:[%s0 + $0xc] sm:$0xf]
    %v39 = vld [vmem:[%s0 + $0x10] sm:$0xf]
    %v40 = vld [vmem:[%s0 + $0x14] sm:$0xf]
    %v41 = vld [vmem:[%s0 + $0x18] sm:$0xf]
    %v42 = vld [vmem:[%s0 + $0x1c] sm:$0xf]
    %v43 = vld [vmem:[%s1] sm:$0xf]
    %v44 = vld [vmem:[%s1 + $0x4] sm:$0xf]
    %v45 = vld [vmem:[%s1 + $0x8] sm:$0xf]
    %v46 = vld [vmem:[%s1 + $0xc] sm:$0xf]
    %v47 = vld [vmem:[%s1 + $0x10] sm:$0xf]
    %v48 = vld [vmem:[%s1 + $0x14] sm:$0xf]
    %v49 = vld [vmem:[%s1 + $0x18] sm:$0xf]
    %v50 = vld [vmem:[%s1 + $0x1c] sm:$0xf]
    %v51 = vld [vmem:[%s2] sm:$0xff]
    %v52 = vld [vmem:[%s2 + $0x8] sm:$0xff]
    %v53 = vld [vmem:[%s2 + $0x10] sm:$0xff]
    %v54 = vld [vmem:[%s2 + $0x18] sm:$0xff]
    %v55 = vld [vmem:[%s2 + $0x20] sm:$0xff]
    %v56 = vld [vmem:[%s2 + $0x28] sm:$0xff]
    %v57 = vld [vmem:[%s2 + $0x30] sm:$0xff]
    %v58 = vld [vmem:[%s2 + $0x38] sm:$0xff]
    %v59 = vpack.c.bf16 %v52, %v51
    %v60 = vpack.c.bf16 %v54, %v53
    %v61 = vpack.c.bf16 %v56, %v55
    %v62 = vpack.c.bf16 %v58, %v57
    %v63 = vld [vmem:[#allocation2] sm:$0xff]
    %v64 = vld [vmem:[#allocation2 + $0x8] sm:$0xff]
    %v65 = vld [vmem:[#allocation2 + $0x10] sm:$0xff]
    %v66 = vld [vmem:[#allocation2 + $0x18] sm:$0xff]
    %v71 = vunpack.c.l.b16 %v63
    %v72 = vunpack.c.h.b16 %v63
    %v73 = vunpack.c.l.b16 %v64
    %v74 = vunpack.c.h.b16 %v64
    %v75 = vunpack.c.l.b16 %v65
    %v76 = vunpack.c.h.b16 %v65
    %v77 = vunpack.c.l.b16 %v66
    %v78 = vunpack.c.h.b16 %v66
    %v79 = vpack.c.b16 %v73, %v71
    %v80 = vpack.c.b16 %v74, %v72
    %v81 = vpack.c.b16 %v77, %v75
    %v82 = vpack.c.b16 %v78, %v76
    %vm87 = vcmask 261120
    %v89 = vsel %vm87, %v59, 0
    %v92 = vsel %vm87, %v60, 0
    %v95 = vsel %vm87, %v61, 0
    %v98 = vsel %vm87, %v62, 0
    %100 = vmatprep.subr.bf16.mxu0 0
    %101 = vmatpush1.bf16.msra.mxu0 0
    %102 = vmatprep.subr.bf16.mxu0 0
    %103 = vmatpush1.bf16.msra.mxu0 0
    %104 = vmatprep.subr.bf16.mxu0 0
    %105 = vmatpush1.bf16.msra.mxu0 0
    %106 = vmatprep.subr.bf16.mxu0 0
    %107 = vmatpush1.bf16.msra.mxu0 0
    %108 = vmatprep.subr.bf16.mxu0 0
    %109 = vmatpush1.bf16.msra.mxu0 0
    %110 = vmatprep.subr.bf16.mxu0 0
    %111 = vmatpush1.bf16.msra.mxu0 0
    %112 = vmatprep.subr.bf16.mxu0 %v82
    %113 = vmatpush1.bf16.msra.mxu0 %v81
    %114 = vmatprep.subr.bf16.mxu0 %v80
    %115 = vmatpush1.bf16.msra.mxu0 %v79
    %116 = vmatprep.subr.bf16.mxu0 0
    %117 = vmatpush2.bf16.msra.mxu0 0
    %118 = vmatprep.subr.bf16.mxu0 0
    %119 = vmatpush2.bf16.msra.mxu0 0
    %120 = vmatprep.subr.bf16.mxu0 0
    %121 = vmatpush2.bf16.msra.mxu0 0
    %122 = vmatprep.subr.bf16.mxu0 0
    %123 = vmatpush2.bf16.msra.mxu0 0
    %124 = vmatprep.subr.bf16.mxu0 0
    %125 = vmatpush2.bf16.msra.mxu0 0
    %126 = vmatprep.subr.bf16.mxu0 0
    %127 = vmatpush2.bf16.msra.mxu0 0
    %128 = vmatprep.subr.bf16.mxu0 0
    %129 = vmatpush2.bf16.msra.mxu0 0
    %130 = vmatprep.subr.bf16.mxu0 0
    %131 = vmatpush2.bf16.msra.mxu0 0
    %132 = vmatprep.mubr.bf16.mxu0 0
    %133 = vmatmul.mubr.bf16.gmra.mxu0 %v89
    %v134 = vpop.f32.mrf.mxu0
    %v135 = vadd.f32 0.0, %v134
    %v136 = vpop.f32.mrf.mxu0
    %v137 = vadd.f32 0.0, %v136
    %v138 = vpop.f32.mrf.mxu0
    %v139 = vadd.f32 0.0, %v138
    %v140 = vpop.f32.mrf.mxu0
    %v141 = vadd.f32 0.0, %v140
    %142 = vmatprep.mubr.bf16.mxu0 0
    %143 = vmatmul.mubr.bf16.gmra.mxu0 %v92
    %v144 = vpop.f32.mrf.mxu0
    %v145 = vadd.f32 0.0, %v144
    %v146 = vpop.f32.mrf.mxu0
    %v147 = vadd.f32 0.0, %v146
    %v148 = vpop.f32.mrf.mxu0
    %v149 = vadd.f32 0.0, %v148
    %v150 = vpop.f32.mrf.mxu0
    %v151 = vadd.f32 0.0, %v150
    %152 = vmatprep.mubr.bf16.mxu0 0
    %153 = vmatmul.mubr.bf16.gmra.mxu0 %v95
    %v154 = vpop.f32.mrf.mxu0
    %v155 = vadd.f32 0.0, %v154
    %v156 = vpop.f32.mrf.mxu0
    %v157 = vadd.f32 0.0, %v156
    %v158 = vpop.f32.mrf.mxu0
    %v159 = vadd.f32 0.0, %v158
    %v160 = vpop.f32.mrf.mxu0
    %v161 = vadd.f32 0.0, %v160
    %162 = vmatprep.mubr.bf16.mxu0 0
    %163 = vmatmul.mubr.bf16.gmra.mxu0 %v98
    %v164 = vpop.f32.mrf.mxu0
    %v165 = vadd.f32 0.0, %v164
    %v166 = vpop.f32.mrf.mxu0
    %v167 = vadd.f32 0.0, %v166
    %v168 = vpop.f32.mrf.mxu0
    %v169 = vadd.f32 0.0, %v168
    %v170 = vpop.f32.mrf.mxu0
    %v171 = vadd.f32 0.0, %v170
    %172 = vdwg.mxu0
    %v173 = vpack.c.bf16 %v139, %v135
    %v174 = vpack.c.bf16 %v149, %v145
    %v175 = vpack.c.bf16 %v159, %v155
    %v176 = vpack.c.bf16 %v169, %v165
    %v185 = vunpack.c.l.b16 %v35
    %v186 = vunpack.c.l.b16 %v36
    %v187 = vunpack.c.l.b16 %v37
    %v188 = vunpack.c.l.b16 %v38
    %v189 = vunpack.c.l.b16 %v39
    %v190 = vunpack.c.l.b16 %v40
    %v191 = vunpack.c.l.b16 %v41
    %v192 = vunpack.c.l.b16 %v42
    %v193 = vpack.c.b16 %v186, %v185
    %v194 = vpack.c.b16 %v188, %v187
    %v195 = vpack.c.b16 %v190, %v189
    %v196 = vpack.c.b16 %v192, %v191
    %vm197 = vcmask 523264
    %v199 = vsel %vm197, %v193, 0
    %v202 = vsel %vm197, %v194, 0
    %v205 = vsel %vm197, %v195, 0
    %v208 = vsel %vm197, %v196, 0
    %210 = vmatprep.subr.bf16.mxu0 0
    %211 = vmatpush1.bf16.msra.mxu0 0
    %212 = vmatprep.subr.bf16.mxu0 0
    %213 = vmatpush1.bf16.msra.mxu0 0
    %214 = vmatprep.subr.bf16.mxu0 0
    %215 = vmatpush1.bf16.msra.mxu0 0
    %216 = vmatprep.subr.bf16.mxu0 0
    %217 = vmatpush1.bf16.msra.mxu0 0
    %218 = vmatprep.subr.bf16.mxu0 0
    %219 = vmatpush1.bf16.msra.mxu0 %v176
    %220 = vmatprep.subr.bf16.mxu0 0
    %221 = vmatpush1.bf16.msra.mxu0 %v175
    %222 = vmatprep.subr.bf16.mxu0 0
    %223 = vmatpush1.bf16.msra.mxu0 %v174
    %224 = vmatprep.subr.bf16.mxu0 0
    %225 = vmatpush1.bf16.msra.mxu0 %v173
    %226 = vmatprep.subr.bf16.mxu0 0
    %227 = vmatpush2.bf16.msra.mxu0 0
    %228 = vmatprep.subr.bf16.mxu0 0
    %229 = vmatpush2.bf16.msra.mxu0 0
    %230 = vmatprep.subr.bf16.mxu0 0
    %231 = vmatpush2.bf16.msra.mxu0 0
    %232 = vmatprep.subr.bf16.mxu0 0
    %233 = vmatpush2.bf16.msra.mxu0 0
    %234 = vmatprep.subr.bf16.mxu0 0
    %235 = vmatpush2.bf16.msra.mxu0 0
    %236 = vmatprep.subr.bf16.mxu0 0
    %237 = vmatpush2.bf16.msra.mxu0 0
    %238 = vmatprep.subr.bf16.mxu0 0
    %239 = vmatpush2.bf16.msra.mxu0 0
    %240 = vmatprep.subr.bf16.mxu0 0
    %241 = vmatpush2.bf16.msra.mxu0 0
    %242 = vmatprep.mubr.bf16.mxu0 0
    %243 = vmatmul.mubr.bf16.gmra.mxu0 %v199
    %v244 = vpop.f32.mrf.mxu0
    %v245 = vadd.f32 %v137, %v244
    %v246 = vpop.f32.mrf.mxu0
    %v247 = vpop.f32.mrf.mxu0
    %v248 = vadd.f32 %v141, %v247
    %v249 = vpop.f32.mrf.mxu0
    %250 = vmatprep.mubr.bf16.mxu0 0
    %251 = vmatmul.mubr.bf16.gmra.mxu0 %v202
    %v252 = vpop.f32.mrf.mxu0
    %v253 = vadd.f32 %v147, %v252
    %v254 = vpop.f32.mrf.mxu0
    %v255 = vpop.f32.mrf.mxu0
    %v256 = vadd.f32 %v151, %v255
    %v257 = vpop.f32.mrf.mxu0
    %258 = vmatprep.mubr.bf16.mxu0 0
    %259 = vmatmul.mubr.bf16.gmra.mxu0 %v205
    %v260 = vpop.f32.mrf.mxu0
    %v261 = vadd.f32 %v157, %v260
    %v262 = vpop.f32.mrf.mxu0
    %v263 = vpop.f32.mrf.mxu0
    %v264 = vadd.f32 %v161, %v263
    %v265 = vpop.f32.mrf.mxu0
    %266 = vmatprep.mubr.bf16.mxu0 0
    %267 = vmatmul.mubr.bf16.gmra.mxu0 %v208
    %v268 = vpop.f32.mrf.mxu0
    %v269 = vadd.f32 %v167, %v268
    %v270 = vpop.f32.mrf.mxu0
    %v271 = vpop.f32.mrf.mxu0
    %v272 = vadd.f32 %v171, %v271
    %v273 = vpop.f32.mrf.mxu0
    %274 = vdwg.mxu0
    %v275 = vld [vmem:[%s4] sm:$0x1]
    %v276 = vlaneseq
    %v277 = vshrl.u32 %v276, 7
    %v278 = vsub.s32 0, %v277
    %v279 = vrot.slane %v275, %v278
    %v280 = vadd.f32 %v245, %v279
    %v281 = vadd.f32 %v248, %v279
    %v282 = vadd.f32 %v253, %v279
    %v283 = vadd.f32 %v256, %v279
    %v284 = vadd.f32 %v261, %v279
    %v285 = vadd.f32 %v264, %v279
    %v286 = vadd.f32 %v269, %v279
    %v287 = vadd.f32 %v272, %v279
    %v288 = vmax.f32 %v280, 0.0
    %v289 = vmax.f32 %v281, 0.0
    %v290 = vmax.f32 %v282, 0.0
    %v291 = vmax.f32 %v283, 0.0
    %v292 = vmax.f32 %v284, 0.0
    %v293 = vmax.f32 %v285, 0.0
    %v294 = vmax.f32 %v286, 0.0
    %v295 = vmax.f32 %v287, 0.0
    %v296 = vpack.c.bf16 %v289, %v288
    %v297 = vpack.c.bf16 %v291, %v290
    %v298 = vpack.c.bf16 %v293, %v292
    %v299 = vpack.c.bf16 %v295, %v294
    %s300 = scalar_lea.vmem [#allocation2], 32
    %v301 = vld [vmem:[%s300] sm:$0xff]
    %v302 = vld [vmem:[%s300 + $0x8] sm:$0xff]
    %v303 = vld [vmem:[%s300 + $0x10] sm:$0xff]
    %v304 = vld [vmem:[%s300 + $0x18] sm:$0xff]
    %v309 = vunpack.c.l.b16 %v301
    %v310 = vunpack.c.h.b16 %v301
    %v311 = vunpack.c.l.b16 %v302
    %v312 = vunpack.c.h.b16 %v302
    %v313 = vunpack.c.l.b16 %v303
    %v314 = vunpack.c.h.b16 %v303
    %v315 = vunpack.c.l.b16 %v304
    %v316 = vunpack.c.h.b16 %v304
    %v317 = vpack.c.b16 %v311, %v309
    %v318 = vpack.c.b16 %v312, %v310
    %v319 = vpack.c.b16 %v315, %v313
    %v320 = vpack.c.b16 %v316, %v314
    %v326 = vsel %vm87, %v296, 0
    %v329 = vsel %vm87, %v297, 0
    %v332 = vsel %vm87, %v298, 0
    %v335 = vsel %vm87, %v299, 0
    %337 = vmatprep.subr.bf16.mxu0 0
    %338 = vmatpush1.bf16.msra.mxu0 0
    %339 = vmatprep.subr.bf16.mxu0 0
    %340 = vmatpush1.bf16.msra.mxu0 0
    %341 = vmatprep.subr.bf16.mxu0 0
    %342 = vmatpush1.bf16.msra.mxu0 0
    %343 = vmatprep.subr.bf16.mxu0 0
    %344 = vmatpush1.bf16.msra.mxu0 0
    %345 = vmatprep.subr.bf16.mxu0 0
    %346 = vmatpush1.bf16.msra.mxu0 0
    %347 = vmatprep.subr.bf16.mxu0 0
    %348 = vmatpush1.bf16.msra.mxu0 0
    %349 = vmatprep.subr.bf16.mxu0 %v320
    %350 = vmatpush1.bf16.msra.mxu0 %v319
    %351 = vmatprep.subr.bf16.mxu0 %v318
    %352 = vmatpush1.bf16.msra.mxu0 %v317
    %353 = vmatprep.subr.bf16.mxu0 0
    %354 = vmatpush2.bf16.msra.mxu0 0
    %355 = vmatprep.subr.bf16.mxu0 0
    %356 = vmatpush2.bf16.msra.mxu0 0
    %357 = vmatprep.subr.bf16.mxu0 0
    %358 = vmatpush2.bf16.msra.mxu0 0
    %359 = vmatprep.subr.bf16.mxu0 0
    %360 = vmatpush2.bf16.msra.mxu0 0
    %361 = vmatprep.subr.bf16.mxu0 0
    %362 = vmatpush2.bf16.msra.mxu0 0
    %363 = vmatprep.subr.bf16.mxu0 0
    %364 = vmatpush2.bf16.msra.mxu0 0
    %365 = vmatprep.subr.bf16.mxu0 0
    %366 = vmatpush2.bf16.msra.mxu0 0
    %367 = vmatprep.subr.bf16.mxu0 0
    %368 = vmatpush2.bf16.msra.mxu0 0
    %369 = vmatprep.mubr.bf16.mxu0 0
    %370 = vmatmul.mubr.bf16.gmra.mxu0 %v326
    %v371 = vpop.f32.mrf.mxu0
    %v372 = vadd.f32 0.0, %v371
    %v373 = vpop.f32.mrf.mxu0
    %v374 = vadd.f32 0.0, %v373
    %v375 = vpop.f32.mrf.mxu0
    %v376 = vadd.f32 0.0, %v375
    %v377 = vpop.f32.mrf.mxu0
    %v378 = vadd.f32 0.0, %v377
    %379 = vmatprep.mubr.bf16.mxu0 0
    %380 = vmatmul.mubr.bf16.gmra.mxu0 %v329
    %v381 = vpop.f32.mrf.mxu0
    %v382 = vadd.f32 0.0, %v381
    %v383 = vpop.f32.mrf.mxu0
    %v384 = vadd.f32 0.0, %v383
    %v385 = vpop.f32.mrf.mxu0
    %v386 = vadd.f32 0.0, %v385
    %v387 = vpop.f32.mrf.mxu0
    %v388 = vadd.f32 0.0, %v387
    %389 = vmatprep.mubr.bf16.mxu0 0
    %390 = vmatmul.mubr.bf16.gmra.mxu0 %v332
    %v391 = vpop.f32.mrf.mxu0
    %v392 = vadd.f32 0.0, %v391
    %v393 = vpop.f32.mrf.mxu0
    %v394 = vadd.f32 0.0, %v393
    %v395 = vpop.f32.mrf.mxu0
    %v396 = vadd.f32 0.0, %v395
    %v397 = vpop.f32.mrf.mxu0
    %v398 = vadd.f32 0.0, %v397
    %399 = vmatprep.mubr.bf16.mxu0 0
    %400 = vmatmul.mubr.bf16.gmra.mxu0 %v335
    %v401 = vpop.f32.mrf.mxu0
    %v402 = vadd.f32 0.0, %v401
    %v403 = vpop.f32.mrf.mxu0
    %v404 = vadd.f32 0.0, %v403
    %v405 = vpop.f32.mrf.mxu0
    %v406 = vadd.f32 0.0, %v405
    %v407 = vpop.f32.mrf.mxu0
    %v408 = vadd.f32 0.0, %v407
    %409 = vdwg.mxu0
    %v410 = vpack.c.bf16 %v376, %v372
    %v411 = vpack.c.bf16 %v386, %v382
    %v412 = vpack.c.bf16 %v396, %v392
    %v413 = vpack.c.bf16 %v406, %v402
    %v422 = vunpack.c.l.b16 %v43
    %v423 = vunpack.c.l.b16 %v44
    %v424 = vunpack.c.l.b16 %v45
    %v425 = vunpack.c.l.b16 %v46
    %v426 = vunpack.c.l.b16 %v47
    %v427 = vunpack.c.l.b16 %v48
    %v428 = vunpack.c.l.b16 %v49
    %v429 = vunpack.c.l.b16 %v50
    %v430 = vpack.c.b16 %v423, %v422
    %v431 = vpack.c.b16 %v425, %v424
    %v432 = vpack.c.b16 %v427, %v426
    %v433 = vpack.c.b16 %v429, %v428
    %v435 = vsel %vm197, %v430, 0
    %v438 = vsel %vm197, %v431, 0
    %v441 = vsel %vm197, %v432, 0
    %v444 = vsel %vm197, %v433, 0
    %446 = vmatprep.subr.bf16.mxu0 0
    %447 = vmatpush1.bf16.msra.mxu0 0
    %448 = vmatprep.subr.bf16.mxu0 0
    %449 = vmatpush1.bf16.msra.mxu0 0
    %450 = vmatprep.subr.bf16.mxu0 0
    %451 = vmatpush1.bf16.msra.mxu0 0
    %452 = vmatprep.subr.bf16.mxu0 0
    %453 = vmatpush1.bf16.msra.mxu0 0
    %454 = vmatprep.subr.bf16.mxu0 0
    %455 = vmatpush1.bf16.msra.mxu0 %v413
    %456 = vmatprep.subr.bf16.mxu0 0
    %457 = vmatpush1.bf16.msra.mxu0 %v412
    %458 = vmatprep.subr.bf16.mxu0 0
    %459 = vmatpush1.bf16.msra.mxu0 %v411
    %460 = vmatprep.subr.bf16.mxu0 0
    %461 = vmatpush1.bf16.msra.mxu0 %v410
    %462 = vmatprep.subr.bf16.mxu0 0
    %463 = vmatpush2.bf16.msra.mxu0 0
    %464 = vmatprep.subr.bf16.mxu0 0
    %465 = vmatpush2.bf16.msra.mxu0 0
    %466 = vmatprep.subr.bf16.mxu0 0
    %467 = vmatpush2.bf16.msra.mxu0 0
    %468 = vmatprep.subr.bf16.mxu0 0
    %469 = vmatpush2.bf16.msra.mxu0 0
    %470 = vmatprep.subr.bf16.mxu0 0
    %471 = vmatpush2.bf16.msra.mxu0 0
    %472 = vmatprep.subr.bf16.mxu0 0
    %473 = vmatpush2.bf16.msra.mxu0 0
    %474 = vmatprep.subr.bf16.mxu0 0
    %475 = vmatpush2.bf16.msra.mxu0 0
    %476 = vmatprep.subr.bf16.mxu0 0
    %477 = vmatpush2.bf16.msra.mxu0 0
    %478 = vmatprep.mubr.bf16.mxu0 0
    %479 = vmatmul.mubr.bf16.gmra.mxu0 %v435
    %v480 = vpop.f32.mrf.mxu0
    %v481 = vadd.f32 %v374, %v480
    %v482 = vpop.f32.mrf.mxu0
    %v483 = vpop.f32.mrf.mxu0
    %v484 = vadd.f32 %v378, %v483
    %v485 = vpop.f32.mrf.mxu0
    %486 = vmatprep.mubr.bf16.mxu0 0
    %487 = vmatmul.mubr.bf16.gmra.mxu0 %v438
    %v488 = vpop.f32.mrf.mxu0
    %v489 = vadd.f32 %v384, %v488
    %v490 = vpop.f32.mrf.mxu0
    %v491 = vpop.f32.mrf.mxu0
    %v492 = vadd.f32 %v388, %v491
    %v493 = vpop.f32.mrf.mxu0
    %494 = vmatprep.mubr.bf16.mxu0 0
    %495 = vmatmul.mubr.bf16.gmra.mxu0 %v441
    %v496 = vpop.f32.mrf.mxu0
    %v497 = vadd.f32 %v394, %v496
    %v498 = vpop.f32.mrf.mxu0
    %v499 = vpop.f32.mrf.mxu0
    %v500 = vadd.f32 %v398, %v499
    %v501 = vpop.f32.mrf.mxu0
    %502 = vmatprep.mubr.bf16.mxu0 0
    %503 = vmatmul.mubr.bf16.gmra.mxu0 %v444
    %v504 = vpop.f32.mrf.mxu0
    %v505 = vadd.f32 %v404, %v504
    %v506 = vpop.f32.mrf.mxu0
    %v507 = vpop.f32.mrf.mxu0
    %v508 = vadd.f32 %v408, %v507
    %v509 = vpop.f32.mrf.mxu0
    %510 = vdwg.mxu0
    %v511 = vld [vmem:[%s4 + $0x1] sm:$0x1]
    %v512 = vlaneseq
    %v513 = vshrl.u32 %v512, 7
    %v514 = vsub.s32 0, %v513
    %v515 = vrot.slane %v511, %v514
    %v516 = vadd.f32 %v481, %v515
    %v517 = vadd.f32 %v484, %v515
    %v518 = vadd.f32 %v489, %v515
    %v519 = vadd.f32 %v492, %v515
    %v520 = vadd.f32 %v497, %v515
    %v521 = vadd.f32 %v500, %v515
    %v522 = vadd.f32 %v505, %v515
    %v523 = vadd.f32 %v508, %v515
    %v524 = vmax.f32 %v516, 0.0
    %v525 = vmax.f32 %v517, 0.0
    %v526 = vmax.f32 %v518, 0.0
    %v527 = vmax.f32 %v519, 0.0
    %v528 = vmax.f32 %v520, 0.0
    %v529 = vmax.f32 %v521, 0.0
    %v530 = vmax.f32 %v522, 0.0
    %v531 = vmax.f32 %v523, 0.0
    %v532 = vpack.c.bf16 %v525, %v524
    %v533 = vpack.c.bf16 %v527, %v526
    %v534 = vpack.c.bf16 %v529, %v528
    %v535 = vpack.c.bf16 %v531, %v530
    %s536 = scalar_lea.vmem [#allocation2], 64
    %v537 = vld [vmem:[%s536] sm:$0xff]
    %v538 = vld [vmem:[%s536 + $0x8] sm:$0xff]
    %v539 = vld [vmem:[%s536 + $0x10] sm:$0xff]
    %v540 = vld [vmem:[%s536 + $0x18] sm:$0xff]
    %v545 = vunpack.c.l.b16 %v537
    %v546 = vunpack.c.h.b16 %v537
    %v547 = vunpack.c.l.b16 %v538
    %v548 = vunpack.c.h.b16 %v538
    %v549 = vunpack.c.l.b16 %v539
    %v550 = vunpack.c.h.b16 %v539
    %v551 = vunpack.c.l.b16 %v540
    %v552 = vunpack.c.h.b16 %v540
    %v553 = vpack.c.b16 %v547, %v545
    %v554 = vpack.c.b16 %v548, %v546
    %v555 = vpack.c.b16 %v551, %v549
    %v556 = vpack.c.b16 %v552, %v550
    %v562 = vsel %vm87, %v532, 0
    %v565 = vsel %vm87, %v533, 0
    %v568 = vsel %vm87, %v534, 0
    %v571 = vsel %vm87, %v535, 0
    %573 = vmatprep.subr.bf16.mxu0 0
    %574 = vmatpush1.bf16.msra.mxu0 0
    %575 = vmatprep.subr.bf16.mxu0 0
    %576 = vmatpush1.bf16.msra.mxu0 0
    %577 = vmatprep.subr.bf16.mxu0 0
    %578 = vmatpush1.bf16.msra.mxu0 0
    %579 = vmatprep.subr.bf16.mxu0 0
    %580 = vmatpush1.bf16.msra.mxu0 0
    %581 = vmatprep.subr.bf16.mxu0 0
    %582 = vmatpush1.bf16.msra.mxu0 0
    %583 = vmatprep.subr.bf16.mxu0 0
    %584 = vmatpush1.bf16.msra.mxu0 0
    %585 = vmatprep.subr.bf16.mxu0 %v556
    %586 = vmatpush1.bf16.msra.mxu0 %v555
    %587 = vmatprep.subr.bf16.mxu0 %v554
    %588 = vmatpush1.bf16.msra.mxu0 %v553
    %589 = vmatprep.subr.bf16.mxu0 0
    %590 = vmatpush2.bf16.msra.mxu0 0
    %591 = vmatprep.subr.bf16.mxu0 0
    %592 = vmatpush2.bf16.msra.mxu0 0
    %593 = vmatprep.subr.bf16.mxu0 0
    %594 = vmatpush2.bf16.msra.mxu0 0
    %595 = vmatprep.subr.bf16.mxu0 0
    %596 = vmatpush2.bf16.msra.mxu0 0
    %597 = vmatprep.subr.bf16.mxu0 0
    %598 = vmatpush2.bf16.msra.mxu0 0
    %599 = vmatprep.subr.bf16.mxu0 0
    %600 = vmatpush2.bf16.msra.mxu0 0
    %601 = vmatprep.subr.bf16.mxu0 0
    %602 = vmatpush2.bf16.msra.mxu0 0
    %603 = vmatprep.subr.bf16.mxu0 0
    %604 = vmatpush2.bf16.msra.mxu0 0
    %605 = vmatprep.mubr.bf16.mxu0 0
    %606 = vmatmul.mubr.bf16.gmra.mxu0 %v562
    %v607 = vpop.f32.mrf.mxu0
    %v608 = vadd.f32 0.0, %v607
    %v609 = vpop.f32.mrf.mxu0
    %v610 = vadd.f32 0.0, %v609
    %v611 = vpop.f32.mrf.mxu0
    %v612 = vadd.f32 0.0, %v611
    %v613 = vpop.f32.mrf.mxu0
    %v614 = vadd.f32 0.0, %v613
    %615 = vmatprep.mubr.bf16.mxu0 0
    %616 = vmatmul.mubr.bf16.gmra.mxu0 %v565
    %v617 = vpop.f32.mrf.mxu0
    %v618 = vadd.f32 0.0, %v617
    %v619 = vpop.f32.mrf.mxu0
    %v620 = vadd.f32 0.0, %v619
    %v621 = vpop.f32.mrf.mxu0
    %v622 = vadd.f32 0.0, %v621
    %v623 = vpop.f32.mrf.mxu0
    %v624 = vadd.f32 0.0, %v623
    %625 = vmatprep.mubr.bf16.mxu0 0
    %626 = vmatmul.mubr.bf16.gmra.mxu0 %v568
    %v627 = vpop.f32.mrf.mxu0
    %v628 = vadd.f32 0.0, %v627
    %v629 = vpop.f32.mrf.mxu0
    %v630 = vadd.f32 0.0, %v629
    %v631 = vpop.f32.mrf.mxu0
    %v632 = vadd.f32 0.0, %v631
    %v633 = vpop.f32.mrf.mxu0
    %v634 = vadd.f32 0.0, %v633
    %635 = vmatprep.mubr.bf16.mxu0 0
    %636 = vmatmul.mubr.bf16.gmra.mxu0 %v571
    %v637 = vpop.f32.mrf.mxu0
    %v638 = vadd.f32 0.0, %v637
    %v639 = vpop.f32.mrf.mxu0
    %v640 = vadd.f32 0.0, %v639
    %v641 = vpop.f32.mrf.mxu0
    %v642 = vadd.f32 0.0, %v641
    %v643 = vpop.f32.mrf.mxu0
    %v644 = vadd.f32 0.0, %v643
    %645 = vdwg.mxu0
    %v646 = vpack.c.bf16 %v612, %v608
    %v647 = vpack.c.bf16 %v622, %v618
    %v648 = vpack.c.bf16 %v632, %v628
    %v649 = vpack.c.bf16 %v642, %v638
    %650 = vmatprep.subr.bf16.mxu0 0
    %651 = vmatpush1.bf16.msra.mxu0 0
    %652 = vmatprep.subr.bf16.mxu0 0
    %653 = vmatpush1.bf16.msra.mxu0 0
    %654 = vmatprep.subr.bf16.mxu0 0
    %655 = vmatpush1.bf16.msra.mxu0 0
    %656 = vmatprep.subr.bf16.mxu0 0
    %657 = vmatpush1.bf16.msra.mxu0 0
    %658 = vmatprep.subr.bf16.mxu0 0
    %659 = vmatpush1.bf16.msra.mxu0 %v649
    %660 = vmatprep.subr.bf16.mxu0 0
    %661 = vmatpush1.bf16.msra.mxu0 %v648
    %662 = vmatprep.subr.bf16.mxu0 0
    %663 = vmatpush1.bf16.msra.mxu0 %v647
    %664 = vmatprep.subr.bf16.mxu0 0
    %665 = vmatpush1.bf16.msra.mxu0 %v646
    %666 = vmatprep.subr.bf16.mxu0 0
    %667 = vmatpush2.bf16.msra.mxu0 0
    %668 = vmatprep.subr.bf16.mxu0 0
    %669 = vmatpush2.bf16.msra.mxu0 0
    %670 = vmatprep.subr.bf16.mxu0 0
    %671 = vmatpush2.bf16.msra.mxu0 0
    %672 = vmatprep.subr.bf16.mxu0 0
    %673 = vmatpush2.bf16.msra.mxu0 0
    %674 = vmatprep.subr.bf16.mxu0 0
    %675 = vmatpush2.bf16.msra.mxu0 0
    %676 = vmatprep.subr.bf16.mxu0 0
    %677 = vmatpush2.bf16.msra.mxu0 0
    %678 = vmatprep.subr.bf16.mxu0 0
    %679 = vmatpush2.bf16.msra.mxu0 0
    %680 = vmatprep.subr.bf16.mxu0 0
    %681 = vmatpush2.bf16.msra.mxu0 0
    %682 = vmatprep.mubr.bf16.mxu0 0
    %683 = vmatmul.mubr.bf16.gmra.mxu0 %v199
    %v684 = vpop.f32.mrf.mxu0
    %v685 = vadd.f32 %v610, %v684
    %v686 = vpop.f32.mrf.mxu0
    %v687 = vpop.f32.mrf.mxu0
    %v688 = vadd.f32 %v614, %v687
    %v689 = vpop.f32.mrf.mxu0
    %690 = vmatprep.mubr.bf16.mxu0 0
    %691 = vmatmul.mubr.bf16.gmra.mxu0 %v202
    %v692 = vpop.f32.mrf.mxu0
    %v693 = vadd.f32 %v620, %v692
    %v694 = vpop.f32.mrf.mxu0
    %v695 = vpop.f32.mrf.mxu0
    %v696 = vadd.f32 %v624, %v695
    %v697 = vpop.f32.mrf.mxu0
    %698 = vmatprep.mubr.bf16.mxu0 0
    %699 = vmatmul.mubr.bf16.gmra.mxu0 %v205
    %v700 = vpop.f32.mrf.mxu0
    %v701 = vadd.f32 %v630, %v700
    %v702 = vpop.f32.mrf.mxu0
    %v703 = vpop.f32.mrf.mxu0
    %v704 = vadd.f32 %v634, %v703
    %v705 = vpop.f32.mrf.mxu0
    %706 = vmatprep.mubr.bf16.mxu0 0
    %707 = vmatmul.mubr.bf16.gmra.mxu0 %v208
    %v708 = vpop.f32.mrf.mxu0
    %v709 = vadd.f32 %v640, %v708
    %v710 = vpop.f32.mrf.mxu0
    %v711 = vpop.f32.mrf.mxu0
    %v712 = vadd.f32 %v644, %v711
    %v713 = vpop.f32.mrf.mxu0
    %714 = vdwg.mxu0
    %v715 = vld [vmem:[%s4 + $0x2] sm:$0x1]
    %v716 = vlaneseq
    %v717 = vshrl.u32 %v716, 7
    %v718 = vsub.s32 0, %v717
    %v719 = vrot.slane %v715, %v718
    %v720 = vadd.f32 %v685, %v719
    %v721 = vadd.f32 %v688, %v719
    %v722 = vadd.f32 %v693, %v719
    %v723 = vadd.f32 %v696, %v719
    %v724 = vadd.f32 %v701, %v719
    %v725 = vadd.f32 %v704, %v719
    %v726 = vadd.f32 %v709, %v719
    %v727 = vadd.f32 %v712, %v719
    %v728 = vmax.f32 %v720, 0.0
    %v729 = vmax.f32 %v721, 0.0
    %v730 = vmax.f32 %v722, 0.0
    %v731 = vmax.f32 %v723, 0.0
    %v732 = vmax.f32 %v724, 0.0
    %v733 = vmax.f32 %v725, 0.0
    %v734 = vmax.f32 %v726, 0.0
    %v735 = vmax.f32 %v727, 0.0
    %v736 = vpack.c.bf16 %v729, %v728
    %v737 = vpack.c.bf16 %v731, %v730
    %v738 = vpack.c.bf16 %v733, %v732
    %v739 = vpack.c.bf16 %v735, %v734
    %s740 = scalar_lea.vmem [#allocation2], 96
    %v741 = vld [vmem:[%s740] sm:$0xff]
    %v742 = vld [vmem:[%s740 + $0x8] sm:$0xff]
    %v743 = vld [vmem:[%s740 + $0x10] sm:$0xff]
    %v744 = vld [vmem:[%s740 + $0x18] sm:$0xff]
    %v749 = vunpack.c.l.b16 %v741
    %v750 = vunpack.c.h.b16 %v741
    %v751 = vunpack.c.l.b16 %v742
    %v752 = vunpack.c.h.b16 %v742
    %v753 = vunpack.c.l.b16 %v743
    %v754 = vunpack.c.h.b16 %v743
    %v755 = vunpack.c.l.b16 %v744
    %v756 = vunpack.c.h.b16 %v744
    %v757 = vpack.c.b16 %v751, %v749
    %v758 = vpack.c.b16 %v752, %v750
    %v759 = vpack.c.b16 %v755, %v753
    %v760 = vpack.c.b16 %v756, %v754
    %v766 = vsel %vm87, %v736, 0
    %v769 = vsel %vm87, %v737, 0
    %v772 = vsel %vm87, %v738, 0
    %v775 = vsel %vm87, %v739, 0
    %777 = vmatprep.subr.bf16.mxu0 0
    %778 = vmatpush1.bf16.msra.mxu0 0
    %779 = vmatprep.subr.bf16.mxu0 0
    %780 = vmatpush1.bf16.msra.mxu0 0
    %781 = vmatprep.subr.bf16.mxu0 0
    %782 = vmatpush1.bf16.msra.mxu0 0
    %783 = vmatprep.subr.bf16.mxu0 0
    %784 = vmatpush1.bf16.msra.mxu0 0
    %785 = vmatprep.subr.bf16.mxu0 0
    %786 = vmatpush1.bf16.msra.mxu0 0
    %787 = vmatprep.subr.bf16.mxu0 0
    %788 = vmatpush1.bf16.msra.mxu0 0
    %789 = vmatprep.subr.bf16.mxu0 %v760
    %790 = vmatpush1.bf16.msra.mxu0 %v759
    %791 = vmatprep.subr.bf16.mxu0 %v758
    %792 = vmatpush1.bf16.msra.mxu0 %v757
    %793 = vmatprep.subr.bf16.mxu0 0
    %794 = vmatpush2.bf16.msra.mxu0 0
    %795 = vmatprep.subr.bf16.mxu0 0
    %796 = vmatpush2.bf16.msra.mxu0 0
    %797 = vmatprep.subr.bf16.mxu0 0
    %798 = vmatpush2.bf16.msra.mxu0 0
    %799 = vmatprep.subr.bf16.mxu0 0
    %800 = vmatpush2.bf16.msra.mxu0 0
    %801 = vmatprep.subr.bf16.mxu0 0
    %802 = vmatpush2.bf16.msra.mxu0 0
    %803 = vmatprep.subr.bf16.mxu0 0
    %804 = vmatpush2.bf16.msra.mxu0 0
    %805 = vmatprep.subr.bf16.mxu0 0
    %806 = vmatpush2.bf16.msra.mxu0 0
    %807 = vmatprep.subr.bf16.mxu0 0
    %808 = vmatpush2.bf16.msra.mxu0 0
    %809 = vmatprep.mubr.bf16.mxu0 0
    %810 = vmatmul.mubr.bf16.gmra.mxu0 %v766
    %v811 = vpop.f32.mrf.mxu0
    %v812 = vadd.f32 0.0, %v811
    %v813 = vpop.f32.mrf.mxu0
    %v814 = vadd.f32 0.0, %v813
    %v815 = vpop.f32.mrf.mxu0
    %v816 = vadd.f32 0.0, %v815
    %v817 = vpop.f32.mrf.mxu0
    %v818 = vadd.f32 0.0, %v817
    %819 = vmatprep.mubr.bf16.mxu0 0
    %820 = vmatmul.mubr.bf16.gmra.mxu0 %v769
    %v821 = vpop.f32.mrf.mxu0
    %v822 = vadd.f32 0.0, %v821
    %v823 = vpop.f32.mrf.mxu0
    %v824 = vadd.f32 0.0, %v823
    %v825 = vpop.f32.mrf.mxu0
    %v826 = vadd.f32 0.0, %v825
    %v827 = vpop.f32.mrf.mxu0
    %v828 = vadd.f32 0.0, %v827
    %829 = vmatprep.mubr.bf16.mxu0 0
    %830 = vmatmul.mubr.bf16.gmra.mxu0 %v772
    %v831 = vpop.f32.mrf.mxu0
    %v832 = vadd.f32 0.0, %v831
    %v833 = vpop.f32.mrf.mxu0
    %v834 = vadd.f32 0.0, %v833
    %v835 = vpop.f32.mrf.mxu0
    %v836 = vadd.f32 0.0, %v835
    %v837 = vpop.f32.mrf.mxu0
    %v838 = vadd.f32 0.0, %v837
    %839 = vmatprep.mubr.bf16.mxu0 0
    %840 = vmatmul.mubr.bf16.gmra.mxu0 %v775
    %v841 = vpop.f32.mrf.mxu0
    %v842 = vadd.f32 0.0, %v841
    %v843 = vpop.f32.mrf.mxu0
    %v844 = vadd.f32 0.0, %v843
    %v845 = vpop.f32.mrf.mxu0
    %v846 = vadd.f32 0.0, %v845
    %v847 = vpop.f32.mrf.mxu0
    %v848 = vadd.f32 0.0, %v847
    %849 = vdwg.mxu0
    %v850 = vpack.c.bf16 %v816, %v812
    %v851 = vpack.c.bf16 %v826, %v822
    %v852 = vpack.c.bf16 %v836, %v832
    %v853 = vpack.c.bf16 %v846, %v842
    %854 = vmatprep.subr.bf16.mxu0 0
    %855 = vmatpush1.bf16.msra.mxu0 0
    %856 = vmatprep.subr.bf16.mxu0 0
    %857 = vmatpush1.bf16.msra.mxu0 0
    %858 = vmatprep.subr.bf16.mxu0 0
    %859 = vmatpush1.bf16.msra.mxu0 0
    %860 = vmatprep.subr.bf16.mxu0 0
    %861 = vmatpush1.bf16.msra.mxu0 0
    %862 = vmatprep.subr.bf16.mxu0 0
    %863 = vmatpush1.bf16.msra.mxu0 %v853
    %864 = vmatprep.subr.bf16.mxu0 0
    %865 = vmatpush1.bf16.msra.mxu0 %v852
    %866 = vmatprep.subr.bf16.mxu0 0
    %867 = vmatpush1.bf16.msra.mxu0 %v851
    %868 = vmatprep.subr.bf16.mxu0 0
    %869 = vmatpush1.bf16.msra.mxu0 %v850
    %870 = vmatprep.subr.bf16.mxu0 0
    %871 = vmatpush2.bf16.msra.mxu0 0
    %872 = vmatprep.subr.bf16.mxu0 0
    %873 = vmatpush2.bf16.msra.mxu0 0
    %874 = vmatprep.subr.bf16.mxu0 0
    %875 = vmatpush2.bf16.msra.mxu0 0
    %876 = vmatprep.subr.bf16.mxu0 0
    %877 = vmatpush2.bf16.msra.mxu0 0
    %878 = vmatprep.subr.bf16.mxu0 0
    %879 = vmatpush2.bf16.msra.mxu0 0
    %880 = vmatprep.subr.bf16.mxu0 0
    %881 = vmatpush2.bf16.msra.mxu0 0
    %882 = vmatprep.subr.bf16.mxu0 0
    %883 = vmatpush2.bf16.msra.mxu0 0
    %884 = vmatprep.subr.bf16.mxu0 0
    %885 = vmatpush2.bf16.msra.mxu0 0
    %886 = vmatprep.mubr.bf16.mxu0 0
    %887 = vmatmul.mubr.bf16.gmra.mxu0 %v435
    %v888 = vpop.f32.mrf.mxu0
    %v889 = vadd.f32 %v814, %v888
    %v890 = vpop.f32.mrf.mxu0
    %v891 = vpop.f32.mrf.mxu0
    %v892 = vadd.f32 %v818, %v891
    %v893 = vpop.f32.mrf.mxu0
    %894 = vmatprep.mubr.bf16.mxu0 0
    %895 = vmatmul.mubr.bf16.gmra.mxu0 %v438
    %v896 = vpop.f32.mrf.mxu0
    %v897 = vadd.f32 %v824, %v896
    %v898 = vpop.f32.mrf.mxu0
    %v899 = vpop.f32.mrf.mxu0
    %v900 = vadd.f32 %v828, %v899
    %v901 = vpop.f32.mrf.mxu0
    %902 = vmatprep.mubr.bf16.mxu0 0
    %903 = vmatmul.mubr.bf16.gmra.mxu0 %v441
    %v904 = vpop.f32.mrf.mxu0
    %v905 = vadd.f32 %v834, %v904
    %v906 = vpop.f32.mrf.mxu0
    %v907 = vpop.f32.mrf.mxu0
    %v908 = vadd.f32 %v838, %v907
    %v909 = vpop.f32.mrf.mxu0
    %910 = vmatprep.mubr.bf16.mxu0 0
    %911 = vmatmul.mubr.bf16.gmra.mxu0 %v444
    %v912 = vpop.f32.mrf.mxu0
    %v913 = vadd.f32 %v844, %v912
    %v914 = vpop.f32.mrf.mxu0
    %v915 = vpop.f32.mrf.mxu0
    %v916 = vadd.f32 %v848, %v915
    %v917 = vpop.f32.mrf.mxu0
    %918 = vdwg.mxu0
    %v919 = vld [vmem:[%s4 + $0x3] sm:$0x1]
    %v920 = vlaneseq
    %v921 = vshrl.u32 %v920, 7
    %v922 = vsub.s32 0, %v921
    %v923 = vrot.slane %v919, %v922
    %v924 = vadd.f32 %v889, %v923
    %v925 = vadd.f32 %v892, %v923
    %v926 = vadd.f32 %v897, %v923
    %v927 = vadd.f32 %v900, %v923
    %v928 = vadd.f32 %v905, %v923
    %v929 = vadd.f32 %v908, %v923
    %v930 = vadd.f32 %v913, %v923
    %v931 = vadd.f32 %v916, %v923
    %v932 = vmax.f32 %v924, 0.0
    %v933 = vmax.f32 %v925, 0.0
    %v934 = vmax.f32 %v926, 0.0
    %v935 = vmax.f32 %v927, 0.0
    %v936 = vmax.f32 %v928, 0.0
    %v937 = vmax.f32 %v929, 0.0
    %v938 = vmax.f32 %v930, 0.0
    %v939 = vmax.f32 %v931, 0.0
    %v940 = vpack.c.bf16 %v933, %v932
    %v941 = vpack.c.bf16 %v935, %v934
    %v942 = vpack.c.bf16 %v937, %v936
    %v943 = vpack.c.bf16 %v939, %v938
    %s944 = scalar_lea.vmem [#allocation2], 128
    %v945 = vld [vmem:[%s944] sm:$0xff]
    %v946 = vld [vmem:[%s944 + $0x8] sm:$0xff]
    %v947 = vld [vmem:[%s944 + $0x10] sm:$0xff]
    %v948 = vld [vmem:[%s944 + $0x18] sm:$0xff]
    %v953 = vunpack.c.l.b16 %v945
    %v954 = vunpack.c.h.b16 %v945
    %v955 = vunpack.c.l.b16 %v946
    %v956 = vunpack.c.h.b16 %v946
    %v957 = vunpack.c.l.b16 %v947
    %v958 = vunpack.c.h.b16 %v947
    %v959 = vunpack.c.l.b16 %v948
    %v960 = vunpack.c.h.b16 %v948
    %v961 = vpack.c.b16 %v955, %v953
    %v962 = vpack.c.b16 %v956, %v954
    %v963 = vpack.c.b16 %v959, %v957
    %v964 = vpack.c.b16 %v960, %v958
    %v970 = vsel %vm87, %v940, 0
    %v973 = vsel %vm87, %v941, 0
    %v976 = vsel %vm87, %v942, 0
    %v979 = vsel %vm87, %v943, 0
    %981 = vmatprep.subr.bf16.mxu0 0
    %982 = vmatpush1.bf16.msra.mxu0 0
    %983 = vmatprep.subr.bf16.mxu0 0
    %984 = vmatpush1.bf16.msra.mxu0 0
    %985 = vmatprep.subr.bf16.mxu0 0
    %986 = vmatpush1.bf16.msra.mxu0 0
    %987 = vmatprep.subr.bf16.mxu0 0
    %988 = vmatpush1.bf16.msra.mxu0 0
    %989 = vmatprep.subr.bf16.mxu0 0
    %990 = vmatpush1.bf16.msra.mxu0 0
    %991 = vmatprep.subr.bf16.mxu0 0
    %992 = vmatpush1.bf16.msra.mxu0 0
    %993 = vmatprep.subr.bf16.mxu0 %v964
    %994 = vmatpush1.bf16.msra.mxu0 %v963
    %995 = vmatprep.subr.bf16.mxu0 %v962
    %996 = vmatpush1.bf16.msra.mxu0 %v961
    %997 = vmatprep.subr.bf16.mxu0 0
    %998 = vmatpush2.bf16.msra.mxu0 0
    %999 = vmatprep.subr.bf16.mxu0 0
    %1000 = vmatpush2.bf16.msra.mxu0 0
    %1001 = vmatprep.subr.bf16.mxu0 0
    %1002 = vmatpush2.bf16.msra.mxu0 0
    %1003 = vmatprep.subr.bf16.mxu0 0
    %1004 = vmatpush2.bf16.msra.mxu0 0
    %1005 = vmatprep.subr.bf16.mxu0 0
    %1006 = vmatpush2.bf16.msra.mxu0 0
    %1007 = vmatprep.subr.bf16.mxu0 0
    %1008 = vmatpush2.bf16.msra.mxu0 0
    %1009 = vmatprep.subr.bf16.mxu0 0
    %1010 = vmatpush2.bf16.msra.mxu0 0
    %1011 = vmatprep.subr.bf16.mxu0 0
    %1012 = vmatpush2.bf16.msra.mxu0 0
    %1013 = vmatprep.mubr.bf16.mxu0 0
    %1014 = vmatmul.mubr.bf16.gmra.mxu0 %v970
    %v1015 = vpop.f32.mrf.mxu0
    %v1016 = vadd.f32 0.0, %v1015
    %v1017 = vpop.f32.mrf.mxu0
    %v1018 = vadd.f32 0.0, %v1017
    %v1019 = vpop.f32.mrf.mxu0
    %v1020 = vadd.f32 0.0, %v1019
    %v1021 = vpop.f32.mrf.mxu0
    %v1022 = vadd.f32 0.0, %v1021
    %1023 = vmatprep.mubr.bf16.mxu0 0
    %1024 = vmatmul.mubr.bf16.gmra.mxu0 %v973
    %v1025 = vpop.f32.mrf.mxu0
    %v1026 = vadd.f32 0.0, %v1025
    %v1027 = vpop.f32.mrf.mxu0
    %v1028 = vadd.f32 0.0, %v1027
    %v1029 = vpop.f32.mrf.mxu0
    %v1030 = vadd.f32 0.0, %v1029
    %v1031 = vpop.f32.mrf.mxu0
    %v1032 = vadd.f32 0.0, %v1031
    %1033 = vmatprep.mubr.bf16.mxu0 0
    %1034 = vmatmul.mubr.bf16.gmra.mxu0 %v976
    %v1035 = vpop.f32.mrf.mxu0
    %v1036 = vadd.f32 0.0, %v1035
    %v1037 = vpop.f32.mrf.mxu0
    %v1038 = vadd.f32 0.0, %v1037
    %v1039 = vpop.f32.mrf.mxu0
    %v1040 = vadd.f32 0.0, %v1039
    %v1041 = vpop.f32.mrf.mxu0
    %v1042 = vadd.f32 0.0, %v1041
    %1043 = vmatprep.mubr.bf16.mxu0 0
    %1044 = vmatmul.mubr.bf16.gmra.mxu0 %v979
    %v1045 = vpop.f32.mrf.mxu0
    %v1046 = vadd.f32 0.0, %v1045
    %v1047 = vpop.f32.mrf.mxu0
    %v1048 = vadd.f32 0.0, %v1047
    %v1049 = vpop.f32.mrf.mxu0
    %v1050 = vadd.f32 0.0, %v1049
    %v1051 = vpop.f32.mrf.mxu0
    %v1052 = vadd.f32 0.0, %v1051
    %1053 = vdwg.mxu0
    %v1054 = vpack.c.bf16 %v1020, %v1016
    %v1055 = vpack.c.bf16 %v1030, %v1026
    %v1056 = vpack.c.bf16 %v1040, %v1036
    %v1057 = vpack.c.bf16 %v1050, %v1046
    %1058 = vmatprep.subr.bf16.mxu0 0
    %1059 = vmatpush1.bf16.msra.mxu0 0
    %1060 = vmatprep.subr.bf16.mxu0 0
    %1061 = vmatpush1.bf16.msra.mxu0 0
    %1062 = vmatprep.subr.bf16.mxu0 0
    %1063 = vmatpush1.bf16.msra.mxu0 0
    %1064 = vmatprep.subr.bf16.mxu0 0
    %1065 = vmatpush1.bf16.msra.mxu0 0
    %1066 = vmatprep.subr.bf16.mxu0 0
    %1067 = vmatpush1.bf16.msra.mxu0 %v1057
    %1068 = vmatprep.subr.bf16.mxu0 0
    %1069 = vmatpush1.bf16.msra.mxu0 %v1056
    %1070 = vmatprep.subr.bf16.mxu0 0
    %1071 = vmatpush1.bf16.msra.mxu0 %v1055
    %1072 = vmatprep.subr.bf16.mxu0 0
    %1073 = vmatpush1.bf16.msra.mxu0 %v1054
    %1074 = vmatprep.subr.bf16.mxu0 0
    %1075 = vmatpush2.bf16.msra.mxu0 0
    %1076 = vmatprep.subr.bf16.mxu0 0
    %1077 = vmatpush2.bf16.msra.mxu0 0
    %1078 = vmatprep.subr.bf16.mxu0 0
    %1079 = vmatpush2.bf16.msra.mxu0 0
    %1080 = vmatprep.subr.bf16.mxu0 0
    %1081 = vmatpush2.bf16.msra.mxu0 0
    %1082 = vmatprep.subr.bf16.mxu0 0
    %1083 = vmatpush2.bf16.msra.mxu0 0
    %1084 = vmatprep.subr.bf16.mxu0 0
    %1085 = vmatpush2.bf16.msra.mxu0 0
    %1086 = vmatprep.subr.bf16.mxu0 0
    %1087 = vmatpush2.bf16.msra.mxu0 0
    %1088 = vmatprep.subr.bf16.mxu0 0
    %1089 = vmatpush2.bf16.msra.mxu0 0
    %1090 = vmatprep.mubr.bf16.mxu0 0
    %1091 = vmatmul.mubr.bf16.gmra.mxu0 %v199
    %v1092 = vpop.f32.mrf.mxu0
    %v1093 = vadd.f32 %v1018, %v1092
    %v1094 = vpop.f32.mrf.mxu0
    %v1095 = vpop.f32.mrf.mxu0
    %v1096 = vadd.f32 %v1022, %v1095
    %v1097 = vpop.f32.mrf.mxu0
    %1098 = vmatprep.mubr.bf16.mxu0 0
    %1099 = vmatmul.mubr.bf16.gmra.mxu0 %v202
    %v1100 = vpop.f32.mrf.mxu0
    %v1101 = vadd.f32 %v1028, %v1100
    %v1102 = vpop.f32.mrf.mxu0
    %v1103 = vpop.f32.mrf.mxu0
    %v1104 = vadd.f32 %v1032, %v1103
    %v1105 = vpop.f32.mrf.mxu0
    %1106 = vmatprep.mubr.bf16.mxu0 0
    %1107 = vmatmul.mubr.bf16.gmra.mxu0 %v205
    %v1108 = vpop.f32.mrf.mxu0
    %v1109 = vadd.f32 %v1038, %v1108
    %v1110 = vpop.f32.mrf.mxu0
    %v1111 = vpop.f32.mrf.mxu0
    %v1112 = vadd.f32 %v1042, %v1111
    %v1113 = vpop.f32.mrf.mxu0
    %1114 = vmatprep.mubr.bf16.mxu0 0
    %1115 = vmatmul.mubr.bf16.gmra.mxu0 %v208
    %v1116 = vpop.f32.mrf.mxu0
    %v1117 = vadd.f32 %v1048, %v1116
    %v1118 = vpop.f32.mrf.mxu0
    %v1119 = vpop.f32.mrf.mxu0
    %v1120 = vadd.f32 %v1052, %v1119
    %v1121 = vpop.f32.mrf.mxu0
    %1122 = vdwg.mxu0
    %v1123 = vld [vmem:[%s4 + $0x4] sm:$0x1]
    %v1124 = vlaneseq
    %v1125 = vshrl.u32 %v1124, 7
    %v1126 = vsub.s32 0, %v1125
    %v1127 = vrot.slane %v1123, %v1126
    %v1128 = vadd.f32 %v1093, %v1127
    %v1129 = vadd.f32 %v1096, %v1127
    %v1130 = vadd.f32 %v1101, %v1127
    %v1131 = vadd.f32 %v1104, %v1127
    %v1132 = vadd.f32 %v1109, %v1127
    %v1133 = vadd.f32 %v1112, %v1127
    %v1134 = vadd.f32 %v1117, %v1127
    %v1135 = vadd.f32 %v1120, %v1127
    %v1136 = vmax.f32 %v1128, 0.0
    %v1137 = vmax.f32 %v1129, 0.0
    %v1138 = vmax.f32 %v1130, 0.0
    %v1139 = vmax.f32 %v1131, 0.0
    %v1140 = vmax.f32 %v1132, 0.0
    %v1141 = vmax.f32 %v1133, 0.0
    %v1142 = vmax.f32 %v1134, 0.0
    %v1143 = vmax.f32 %v1135, 0.0
    %v1144 = vpack.c.bf16 %v1137, %v1136
    %v1145 = vpack.c.bf16 %v1139, %v1138
    %v1146 = vpack.c.bf16 %v1141, %v1140
    %v1147 = vpack.c.bf16 %v1143, %v1142
    %s1148 = scalar_lea.vmem [#allocation2], 160
    %v1149 = vld [vmem:[%s1148] sm:$0xff]
    %v1150 = vld [vmem:[%s1148 + $0x8] sm:$0xff]
    %v1151 = vld [vmem:[%s1148 + $0x10] sm:$0xff]
    %v1152 = vld [vmem:[%s1148 + $0x18] sm:$0xff]
    %v1157 = vunpack.c.l.b16 %v1149
    %v1158 = vunpack.c.h.b16 %v1149
    %v1159 = vunpack.c.l.b16 %v1150
    %v1160 = vunpack.c.h.b16 %v1150
    %v1161 = vunpack.c.l.b16 %v1151
    %v1162 = vunpack.c.h.b16 %v1151
    %v1163 = vunpack.c.l.b16 %v1152
    %v1164 = vunpack.c.h.b16 %v1152
    %v1165 = vpack.c.b16 %v1159, %v1157
    %v1166 = vpack.c.b16 %v1160, %v1158
    %v1167 = vpack.c.b16 %v1163, %v1161
    %v1168 = vpack.c.b16 %v1164, %v1162
    %v1174 = vsel %vm87, %v1144, 0
    %v1177 = vsel %vm87, %v1145, 0
    %v1180 = vsel %vm87, %v1146, 0
    %v1183 = vsel %vm87, %v1147, 0
    %1185 = vmatprep.subr.bf16.mxu0 0
    %1186 = vmatpush1.bf16.msra.mxu0 0
    %1187 = vmatprep.subr.bf16.mxu0 0
    %1188 = vmatpush1.bf16.msra.mxu0 0
    %1189 = vmatprep.subr.bf16.mxu0 0
    %1190 = vmatpush1.bf16.msra.mxu0 0
    %1191 = vmatprep.subr.bf16.mxu0 0
    %1192 = vmatpush1.bf16.msra.mxu0 0
    %1193 = vmatprep.subr.bf16.mxu0 0
    %1194 = vmatpush1.bf16.msra.mxu0 0
    %1195 = vmatprep.subr.bf16.mxu0 0
    %1196 = vmatpush1.bf16.msra.mxu0 0
    %1197 = vmatprep.subr.bf16.mxu0 %v1168
    %1198 = vmatpush1.bf16.msra.mxu0 %v1167
    %1199 = vmatprep.subr.bf16.mxu0 %v1166
    %1200 = vmatpush1.bf16.msra.mxu0 %v1165
    %1201 = vmatprep.subr.bf16.mxu0 0
    %1202 = vmatpush2.bf16.msra.mxu0 0
    %1203 = vmatprep.subr.bf16.mxu0 0
    %1204 = vmatpush2.bf16.msra.mxu0 0
    %1205 = vmatprep.subr.bf16.mxu0 0
    %1206 = vmatpush2.bf16.msra.mxu0 0
    %1207 = vmatprep.subr.bf16.mxu0 0
    %1208 = vmatpush2.bf16.msra.mxu0 0
    %1209 = vmatprep.subr.bf16.mxu0 0
    %1210 = vmatpush2.bf16.msra.mxu0 0
    %1211 = vmatprep.subr.bf16.mxu0 0
    %1212 = vmatpush2.bf16.msra.mxu0 0
    %1213 = vmatprep.subr.bf16.mxu0 0
    %1214 = vmatpush2.bf16.msra.mxu0 0
    %1215 = vmatprep.subr.bf16.mxu0 0
    %1216 = vmatpush2.bf16.msra.mxu0 0
    %1217 = vmatprep.mubr.bf16.mxu0 0
    %1218 = vmatmul.mubr.bf16.gmra.mxu0 %v1174
    %v1219 = vpop.f32.mrf.mxu0
    %v1220 = vadd.f32 0.0, %v1219
    %v1221 = vpop.f32.mrf.mxu0
    %v1222 = vadd.f32 0.0, %v1221
    %v1223 = vpop.f32.mrf.mxu0
    %v1224 = vadd.f32 0.0, %v1223
    %v1225 = vpop.f32.mrf.mxu0
    %v1226 = vadd.f32 0.0, %v1225
    %1227 = vmatprep.mubr.bf16.mxu0 0
    %1228 = vmatmul.mubr.bf16.gmra.mxu0 %v1177
    %v1229 = vpop.f32.mrf.mxu0
    %v1230 = vadd.f32 0.0, %v1229
    %v1231 = vpop.f32.mrf.mxu0
    %v1232 = vadd.f32 0.0, %v1231
    %v1233 = vpop.f32.mrf.mxu0
    %v1234 = vadd.f32 0.0, %v1233
    %v1235 = vpop.f32.mrf.mxu0
    %v1236 = vadd.f32 0.0, %v1235
    %1237 = vmatprep.mubr.bf16.mxu0 0
    %1238 = vmatmul.mubr.bf16.gmra.mxu0 %v1180
    %v1239 = vpop.f32.mrf.mxu0
    %v1240 = vadd.f32 0.0, %v1239
    %v1241 = vpop.f32.mrf.mxu0
    %v1242 = vadd.f32 0.0, %v1241
    %v1243 = vpop.f32.mrf.mxu0
    %v1244 = vadd.f32 0.0, %v1243
    %v1245 = vpop.f32.mrf.mxu0
    %v1246 = vadd.f32 0.0, %v1245
    %1247 = vmatprep.mubr.bf16.mxu0 0
    %1248 = vmatmul.mubr.bf16.gmra.mxu0 %v1183
    %v1249 = vpop.f32.mrf.mxu0
    %v1250 = vadd.f32 0.0, %v1249
    %v1251 = vpop.f32.mrf.mxu0
    %v1252 = vadd.f32 0.0, %v1251
    %v1253 = vpop.f32.mrf.mxu0
    %v1254 = vadd.f32 0.0, %v1253
    %v1255 = vpop.f32.mrf.mxu0
    %v1256 = vadd.f32 0.0, %v1255
    %1257 = vdwg.mxu0
    %v1258 = vpack.c.bf16 %v1224, %v1220
    %v1259 = vpack.c.bf16 %v1234, %v1230
    %v1260 = vpack.c.bf16 %v1244, %v1240
    %v1261 = vpack.c.bf16 %v1254, %v1250
    %1262 = vmatprep.subr.bf16.mxu0 0
    %1263 = vmatpush1.bf16.msra.mxu0 0
    %1264 = vmatprep.subr.bf16.mxu0 0
    %1265 = vmatpush1.bf16.msra.mxu0 0
    %1266 = vmatprep.subr.bf16.mxu0 0
    %1267 = vmatpush1.bf16.msra.mxu0 0
    %1268 = vmatprep.subr.bf16.mxu0 0
    %1269 = vmatpush1.bf16.msra.mxu0 0
    %1270 = vmatprep.subr.bf16.mxu0 0
    %1271 = vmatpush1.bf16.msra.mxu0 %v1261
    %1272 = vmatprep.subr.bf16.mxu0 0
    %1273 = vmatpush1.bf16.msra.mxu0 %v1260
    %1274 = vmatprep.subr.bf16.mxu0 0
    %1275 = vmatpush1.bf16.msra.mxu0 %v1259
    %1276 = vmatprep.subr.bf16.mxu0 0
    %1277 = vmatpush1.bf16.msra.mxu0 %v1258
    %1278 = vmatprep.subr.bf16.mxu0 0
    %1279 = vmatpush2.bf16.msra.mxu0 0
    %1280 = vmatprep.subr.bf16.mxu0 0
    %1281 = vmatpush2.bf16.msra.mxu0 0
    %1282 = vmatprep.subr.bf16.mxu0 0
    %1283 = vmatpush2.bf16.msra.mxu0 0
    %1284 = vmatprep.subr.bf16.mxu0 0
    %1285 = vmatpush2.bf16.msra.mxu0 0
    %1286 = vmatprep.subr.bf16.mxu0 0
    %1287 = vmatpush2.bf16.msra.mxu0 0
    %1288 = vmatprep.subr.bf16.mxu0 0
    %1289 = vmatpush2.bf16.msra.mxu0 0
    %1290 = vmatprep.subr.bf16.mxu0 0
    %1291 = vmatpush2.bf16.msra.mxu0 0
    %1292 = vmatprep.subr.bf16.mxu0 0
    %1293 = vmatpush2.bf16.msra.mxu0 0
    %1294 = vmatprep.mubr.bf16.mxu0 0
    %1295 = vmatmul.mubr.bf16.gmra.mxu0 %v435
    %v1296 = vpop.f32.mrf.mxu0
    %v1297 = vadd.f32 %v1222, %v1296
    %v1298 = vpop.f32.mrf.mxu0
    %v1299 = vpop.f32.mrf.mxu0
    %v1300 = vadd.f32 %v1226, %v1299
    %v1301 = vpop.f32.mrf.mxu0
    %1302 = vmatprep.mubr.bf16.mxu0 0
    %1303 = vmatmul.mubr.bf16.gmra.mxu0 %v438
    %v1304 = vpop.f32.mrf.mxu0
    %v1305 = vadd.f32 %v1232, %v1304
    %v1306 = vpop.f32.mrf.mxu0
    %v1307 = vpop.f32.mrf.mxu0
    %v1308 = vadd.f32 %v1236, %v1307
    %v1309 = vpop.f32.mrf.mxu0
    %1310 = vmatprep.mubr.bf16.mxu0 0
    %1311 = vmatmul.mubr.bf16.gmra.mxu0 %v441
    %v1312 = vpop.f32.mrf.mxu0
    %v1313 = vadd.f32 %v1242, %v1312
    %v1314 = vpop.f32.mrf.mxu0
    %v1315 = vpop.f32.mrf.mxu0
    %v1316 = vadd.f32 %v1246, %v1315
    %v1317 = vpop.f32.mrf.mxu0
    %1318 = vmatprep.mubr.bf16.mxu0 0
    %1319 = vmatmul.mubr.bf16.gmra.mxu0 %v444
    %v1320 = vpop.f32.mrf.mxu0
    %v1321 = vadd.f32 %v1252, %v1320
    %v1322 = vpop.f32.mrf.mxu0
    %v1323 = vpop.f32.mrf.mxu0
    %v1324 = vadd.f32 %v1256, %v1323
    %v1325 = vpop.f32.mrf.mxu0
    %1326 = vdwg.mxu0
    %v1327 = vld [vmem:[%s4 + $0x5] sm:$0x1]
    %v1328 = vlaneseq
    %v1329 = vshrl.u32 %v1328, 7
    %v1330 = vsub.s32 0, %v1329
    %v1331 = vrot.slane %v1327, %v1330
    %v1332 = vadd.f32 %v1297, %v1331
    %v1333 = vadd.f32 %v1300, %v1331
    %v1334 = vadd.f32 %v1305, %v1331
    %v1335 = vadd.f32 %v1308, %v1331
    %v1336 = vadd.f32 %v1313, %v1331
    %v1337 = vadd.f32 %v1316, %v1331
    %v1338 = vadd.f32 %v1321, %v1331
    %v1339 = vadd.f32 %v1324, %v1331
    %v1340 = vmax.f32 %v1332, 0.0
    %v1341 = vmax.f32 %v1333, 0.0
    %v1342 = vmax.f32 %v1334, 0.0
    %v1343 = vmax.f32 %v1335, 0.0
    %v1344 = vmax.f32 %v1336, 0.0
    %v1345 = vmax.f32 %v1337, 0.0
    %v1346 = vmax.f32 %v1338, 0.0
    %v1347 = vmax.f32 %v1339, 0.0
    %v1348 = vpack.c.bf16 %v1341, %v1340
    %v1349 = vpack.c.bf16 %v1343, %v1342
    %v1350 = vpack.c.bf16 %v1345, %v1344
    %v1351 = vpack.c.bf16 %v1347, %v1346
    %s1352 = scalar_lea.vmem [#allocation2], 192
    %v1353 = vld [vmem:[%s1352] sm:$0xff]
    %v1354 = vld [vmem:[%s1352 + $0x8] sm:$0xff]
    %v1355 = vld [vmem:[%s1352 + $0x10] sm:$0xff]
    %v1356 = vld [vmem:[%s1352 + $0x18] sm:$0xff]
    %v1361 = vunpack.c.l.b16 %v1353
    %v1362 = vunpack.c.h.b16 %v1353
    %v1363 = vunpack.c.l.b16 %v1354
    %v1364 = vunpack.c.h.b16 %v1354
    %v1365 = vunpack.c.l.b16 %v1355
    %v1366 = vunpack.c.h.b16 %v1355
    %v1367 = vunpack.c.l.b16 %v1356
    %v1368 = vunpack.c.h.b16 %v1356
    %v1369 = vpack.c.b16 %v1363, %v1361
    %v1370 = vpack.c.b16 %v1364, %v1362
    %v1371 = vpack.c.b16 %v1367, %v1365
    %v1372 = vpack.c.b16 %v1368, %v1366
    %v1378 = vsel %vm87, %v1348, 0
    %v1381 = vsel %vm87, %v1349, 0
    %v1384 = vsel %vm87, %v1350, 0
    %v1387 = vsel %vm87, %v1351, 0
    %1389 = vmatprep.subr.bf16.mxu0 0
    %1390 = vmatpush1.bf16.msra.mxu0 0
    %1391 = vmatprep.subr.bf16.mxu0 0
    %1392 = vmatpush1.bf16.msra.mxu0 0
    %1393 = vmatprep.subr.bf16.mxu0 0
    %1394 = vmatpush1.bf16.msra.mxu0 0
    %1395 = vmatprep.subr.bf16.mxu0 0
    %1396 = vmatpush1.bf16.msra.mxu0 0
    %1397 = vmatprep.subr.bf16.mxu0 0
    %1398 = vmatpush1.bf16.msra.mxu0 0
    %1399 = vmatprep.subr.bf16.mxu0 0
    %1400 = vmatpush1.bf16.msra.mxu0 0
    %1401 = vmatprep.subr.bf16.mxu0 %v1372
    %1402 = vmatpush1.bf16.msra.mxu0 %v1371
    %1403 = vmatprep.subr.bf16.mxu0 %v1370
    %1404 = vmatpush1.bf16.msra.mxu0 %v1369
    %1405 = vmatprep.subr.bf16.mxu0 0
    %1406 = vmatpush2.bf16.msra.mxu0 0
    %1407 = vmatprep.subr.bf16.mxu0 0
    %1408 = vmatpush2.bf16.msra.mxu0 0
    %1409 = vmatprep.subr.bf16.mxu0 0
    %1410 = vmatpush2.bf16.msra.mxu0 0
    %1411 = vmatprep.subr.bf16.mxu0 0
    %1412 = vmatpush2.bf16.msra.mxu0 0
    %1413 = vmatprep.subr.bf16.mxu0 0
    %1414 = vmatpush2.bf16.msra.mxu0 0
    %1415 = vmatprep.subr.bf16.mxu0 0
    %1416 = vmatpush2.bf16.msra.mxu0 0
    %1417 = vmatprep.subr.bf16.mxu0 0
    %1418 = vmatpush2.bf16.msra.mxu0 0
    %1419 = vmatprep.subr.bf16.mxu0 0
    %1420 = vmatpush2.bf16.msra.mxu0 0
    %1421 = vmatprep.mubr.bf16.mxu0 0
    %1422 = vmatmul.mubr.bf16.gmra.mxu0 %v1378
    %v1423 = vpop.f32.mrf.mxu0
    %v1424 = vadd.f32 0.0, %v1423
    %v1425 = vpop.f32.mrf.mxu0
    %v1426 = vadd.f32 0.0, %v1425
    %v1427 = vpop.f32.mrf.mxu0
    %v1428 = vadd.f32 0.0, %v1427
    %v1429 = vpop.f32.mrf.mxu0
    %v1430 = vadd.f32 0.0, %v1429
    %1431 = vmatprep.mubr.bf16.mxu0 0
    %1432 = vmatmul.mubr.bf16.gmra.mxu0 %v1381
    %v1433 = vpop.f32.mrf.mxu0
    %v1434 = vadd.f32 0.0, %v1433
    %v1435 = vpop.f32.mrf.mxu0
    %v1436 = vadd.f32 0.0, %v1435
    %v1437 = vpop.f32.mrf.mxu0
    %v1438 = vadd.f32 0.0, %v1437
    %v1439 = vpop.f32.mrf.mxu0
    %v1440 = vadd.f32 0.0, %v1439
    %1441 = vmatprep.mubr.bf16.mxu0 0
    %1442 = vmatmul.mubr.bf16.gmra.mxu0 %v1384
    %v1443 = vpop.f32.mrf.mxu0
    %v1444 = vadd.f32 0.0, %v1443
    %v1445 = vpop.f32.mrf.mxu0
    %v1446 = vadd.f32 0.0, %v1445
    %v1447 = vpop.f32.mrf.mxu0
    %v1448 = vadd.f32 0.0, %v1447
    %v1449 = vpop.f32.mrf.mxu0
    %v1450 = vadd.f32 0.0, %v1449
    %1451 = vmatprep.mubr.bf16.mxu0 0
    %1452 = vmatmul.mubr.bf16.gmra.mxu0 %v1387
    %v1453 = vpop.f32.mrf.mxu0
    %v1454 = vadd.f32 0.0, %v1453
    %v1455 = vpop.f32.mrf.mxu0
    %v1456 = vadd.f32 0.0, %v1455
    %v1457 = vpop.f32.mrf.mxu0
    %v1458 = vadd.f32 0.0, %v1457
    %v1459 = vpop.f32.mrf.mxu0
    %v1460 = vadd.f32 0.0, %v1459
    %1461 = vdwg.mxu0
    %v1462 = vpack.c.bf16 %v1428, %v1424
    %v1463 = vpack.c.bf16 %v1438, %v1434
    %v1464 = vpack.c.bf16 %v1448, %v1444
    %v1465 = vpack.c.bf16 %v1458, %v1454
    %1466 = vmatprep.subr.bf16.mxu0 0
    %1467 = vmatpush1.bf16.msra.mxu0 0
    %1468 = vmatprep.subr.bf16.mxu0 0
    %1469 = vmatpush1.bf16.msra.mxu0 0
    %1470 = vmatprep.subr.bf16.mxu0 0
    %1471 = vmatpush1.bf16.msra.mxu0 0
    %1472 = vmatprep.subr.bf16.mxu0 0
    %1473 = vmatpush1.bf16.msra.mxu0 0
    %1474 = vmatprep.subr.bf16.mxu0 0
    %1475 = vmatpush1.bf16.msra.mxu0 %v1465
    %1476 = vmatprep.subr.bf16.mxu0 0
    %1477 = vmatpush1.bf16.msra.mxu0 %v1464
    %1478 = vmatprep.subr.bf16.mxu0 0
    %1479 = vmatpush1.bf16.msra.mxu0 %v1463
    %1480 = vmatprep.subr.bf16.mxu0 0
    %1481 = vmatpush1.bf16.msra.mxu0 %v1462
    %1482 = vmatprep.subr.bf16.mxu0 0
    %1483 = vmatpush2.bf16.msra.mxu0 0
    %1484 = vmatprep.subr.bf16.mxu0 0
    %1485 = vmatpush2.bf16.msra.mxu0 0
    %1486 = vmatprep.subr.bf16.mxu0 0
    %1487 = vmatpush2.bf16.msra.mxu0 0
    %1488 = vmatprep.subr.bf16.mxu0 0
    %1489 = vmatpush2.bf16.msra.mxu0 0
    %1490 = vmatprep.subr.bf16.mxu0 0
    %1491 = vmatpush2.bf16.msra.mxu0 0
    %1492 = vmatprep.subr.bf16.mxu0 0
    %1493 = vmatpush2.bf16.msra.mxu0 0
    %1494 = vmatprep.subr.bf16.mxu0 0
    %1495 = vmatpush2.bf16.msra.mxu0 0
    %1496 = vmatprep.subr.bf16.mxu0 0
    %1497 = vmatpush2.bf16.msra.mxu0 0
    %1498 = vmatprep.mubr.bf16.mxu0 0
    %1499 = vmatmul.mubr.bf16.gmra.mxu0 %v199
    %v1500 = vpop.f32.mrf.mxu0
    %v1501 = vadd.f32 %v1426, %v1500
    %v1502 = vpop.f32.mrf.mxu0
    %v1503 = vpop.f32.mrf.mxu0
    %v1504 = vadd.f32 %v1430, %v1503
    %v1505 = vpop.f32.mrf.mxu0
    %1506 = vmatprep.mubr.bf16.mxu0 0
    %1507 = vmatmul.mubr.bf16.gmra.mxu0 %v202
    %v1508 = vpop.f32.mrf.mxu0
    %v1509 = vadd.f32 %v1436, %v1508
    %v1510 = vpop.f32.mrf.mxu0
    %v1511 = vpop.f32.mrf.mxu0
    %v1512 = vadd.f32 %v1440, %v1511
    %v1513 = vpop.f32.mrf.mxu0
    %1514 = vmatprep.mubr.bf16.mxu0 0
    %1515 = vmatmul.mubr.bf16.gmra.mxu0 %v205
    %v1516 = vpop.f32.mrf.mxu0
    %v1517 = vadd.f32 %v1446, %v1516
    %v1518 = vpop.f32.mrf.mxu0
    %v1519 = vpop.f32.mrf.mxu0
    %v1520 = vadd.f32 %v1450, %v1519
    %v1521 = vpop.f32.mrf.mxu0
    %1522 = vmatprep.mubr.bf16.mxu0 0
    %1523 = vmatmul.mubr.bf16.gmra.mxu0 %v208
    %v1524 = vpop.f32.mrf.mxu0
    %v1525 = vadd.f32 %v1456, %v1524
    %v1526 = vpop.f32.mrf.mxu0
    %v1527 = vpop.f32.mrf.mxu0
    %v1528 = vadd.f32 %v1460, %v1527
    %v1529 = vpop.f32.mrf.mxu0
    %1530 = vdwg.mxu0
    %v1531 = vld [vmem:[%s4 + $0x6] sm:$0x1]
    %v1532 = vlaneseq
    %v1533 = vshrl.u32 %v1532, 7
    %v1534 = vsub.s32 0, %v1533
    %v1535 = vrot.slane %v1531, %v1534
    %v1536 = vadd.f32 %v1501, %v1535
    %v1537 = vadd.f32 %v1504, %v1535
    %v1538 = vadd.f32 %v1509, %v1535
    %v1539 = vadd.f32 %v1512, %v1535
    %v1540 = vadd.f32 %v1517, %v1535
    %v1541 = vadd.f32 %v1520, %v1535
    %v1542 = vadd.f32 %v1525, %v1535
    %v1543 = vadd.f32 %v1528, %v1535
    %v1544 = vmax.f32 %v1536, 0.0
    %v1545 = vmax.f32 %v1537, 0.0
    %v1546 = vmax.f32 %v1538, 0.0
    %v1547 = vmax.f32 %v1539, 0.0
    %v1548 = vmax.f32 %v1540, 0.0
    %v1549 = vmax.f32 %v1541, 0.0
    %v1550 = vmax.f32 %v1542, 0.0
    %v1551 = vmax.f32 %v1543, 0.0
    %v1552 = vpack.c.bf16 %v1545, %v1544
    %v1553 = vpack.c.bf16 %v1547, %v1546
    %v1554 = vpack.c.bf16 %v1549, %v1548
    %v1555 = vpack.c.bf16 %v1551, %v1550
    %s1556 = scalar_lea.vmem [#allocation2], 224
    %v1557 = vld [vmem:[%s1556] sm:$0xff]
    %v1558 = vld [vmem:[%s1556 + $0x8] sm:$0xff]
    %v1559 = vld [vmem:[%s1556 + $0x10] sm:$0xff]
    %v1560 = vld [vmem:[%s1556 + $0x18] sm:$0xff]
    %v1565 = vunpack.c.l.b16 %v1557
    %v1566 = vunpack.c.h.b16 %v1557
    %v1567 = vunpack.c.l.b16 %v1558
    %v1568 = vunpack.c.h.b16 %v1558
    %v1569 = vunpack.c.l.b16 %v1559
    %v1570 = vunpack.c.h.b16 %v1559
    %v1571 = vunpack.c.l.b16 %v1560
    %v1572 = vunpack.c.h.b16 %v1560
    %v1573 = vpack.c.b16 %v1567, %v1565
    %v1574 = vpack.c.b16 %v1568, %v1566
    %v1575 = vpack.c.b16 %v1571, %v1569
    %v1576 = vpack.c.b16 %v1572, %v1570
    %v1582 = vsel %vm87, %v1552, 0
    %v1585 = vsel %vm87, %v1553, 0
    %v1588 = vsel %vm87, %v1554, 0
    %v1591 = vsel %vm87, %v1555, 0
    %1593 = vmatprep.subr.bf16.mxu0 0
    %1594 = vmatpush1.bf16.msra.mxu0 0
    %1595 = vmatprep.subr.bf16.mxu0 0
    %1596 = vmatpush1.bf16.msra.mxu0 0
    %1597 = vmatprep.subr.bf16.mxu0 0
    %1598 = vmatpush1.bf16.msra.mxu0 0
    %1599 = vmatprep.subr.bf16.mxu0 0
    %1600 = vmatpush1.bf16.msra.mxu0 0
    %1601 = vmatprep.subr.bf16.mxu0 0
    %1602 = vmatpush1.bf16.msra.mxu0 0
    %1603 = vmatprep.subr.bf16.mxu0 0
    %1604 = vmatpush1.bf16.msra.mxu0 0
    %1605 = vmatprep.subr.bf16.mxu0 %v1576
    %1606 = vmatpush1.bf16.msra.mxu0 %v1575
    %1607 = vmatprep.subr.bf16.mxu0 %v1574
    %1608 = vmatpush1.bf16.msra.mxu0 %v1573
    %1609 = vmatprep.subr.bf16.mxu0 0
    %1610 = vmatpush2.bf16.msra.mxu0 0
    %1611 = vmatprep.subr.bf16.mxu0 0
    %1612 = vmatpush2.bf16.msra.mxu0 0
    %1613 = vmatprep.subr.bf16.mxu0 0
    %1614 = vmatpush2.bf16.msra.mxu0 0
    %1615 = vmatprep.subr.bf16.mxu0 0
    %1616 = vmatpush2.bf16.msra.mxu0 0
    %1617 = vmatprep.subr.bf16.mxu0 0
    %1618 = vmatpush2.bf16.msra.mxu0 0
    %1619 = vmatprep.subr.bf16.mxu0 0
    %1620 = vmatpush2.bf16.msra.mxu0 0
    %1621 = vmatprep.subr.bf16.mxu0 0
    %1622 = vmatpush2.bf16.msra.mxu0 0
    %1623 = vmatprep.subr.bf16.mxu0 0
    %1624 = vmatpush2.bf16.msra.mxu0 0
    %1625 = vmatprep.mubr.bf16.mxu0 0
    %1626 = vmatmul.mubr.bf16.gmra.mxu0 %v1582
    %v1627 = vpop.f32.mrf.mxu0
    %v1628 = vadd.f32 0.0, %v1627
    %v1629 = vpop.f32.mrf.mxu0
    %v1630 = vadd.f32 0.0, %v1629
    %v1631 = vpop.f32.mrf.mxu0
    %v1632 = vadd.f32 0.0, %v1631
    %v1633 = vpop.f32.mrf.mxu0
    %v1634 = vadd.f32 0.0, %v1633
    %1635 = vmatprep.mubr.bf16.mxu0 0
    %1636 = vmatmul.mubr.bf16.gmra.mxu0 %v1585
    %v1637 = vpop.f32.mrf.mxu0
    %v1638 = vadd.f32 0.0, %v1637
    %v1639 = vpop.f32.mrf.mxu0
    %v1640 = vadd.f32 0.0, %v1639
    %v1641 = vpop.f32.mrf.mxu0
    %v1642 = vadd.f32 0.0, %v1641
    %v1643 = vpop.f32.mrf.mxu0
    %v1644 = vadd.f32 0.0, %v1643
    %1645 = vmatprep.mubr.bf16.mxu0 0
    %1646 = vmatmul.mubr.bf16.gmra.mxu0 %v1588
    %v1647 = vpop.f32.mrf.mxu0
    %v1648 = vadd.f32 0.0, %v1647
    %v1649 = vpop.f32.mrf.mxu0
    %v1650 = vadd.f32 0.0, %v1649
    %v1651 = vpop.f32.mrf.mxu0
    %v1652 = vadd.f32 0.0, %v1651
    %v1653 = vpop.f32.mrf.mxu0
    %v1654 = vadd.f32 0.0, %v1653
    %1655 = vmatprep.mubr.bf16.mxu0 0
    %1656 = vmatmul.mubr.bf16.gmra.mxu0 %v1591
    %v1657 = vpop.f32.mrf.mxu0
    %v1658 = vadd.f32 0.0, %v1657
    %v1659 = vpop.f32.mrf.mxu0
    %v1660 = vadd.f32 0.0, %v1659
    %v1661 = vpop.f32.mrf.mxu0
    %v1662 = vadd.f32 0.0, %v1661
    %v1663 = vpop.f32.mrf.mxu0
    %v1664 = vadd.f32 0.0, %v1663
    %1665 = vdwg.mxu0
    %v1666 = vpack.c.bf16 %v1632, %v1628
    %v1667 = vpack.c.bf16 %v1642, %v1638
    %v1668 = vpack.c.bf16 %v1652, %v1648
    %v1669 = vpack.c.bf16 %v1662, %v1658
    %1670 = vmatprep.subr.bf16.mxu0 0
    %1671 = vmatpush1.bf16.msra.mxu0 0
    %1672 = vmatprep.subr.bf16.mxu0 0
    %1673 = vmatpush1.bf16.msra.mxu0 0
    %1674 = vmatprep.subr.bf16.mxu0 0
    %1675 = vmatpush1.bf16.msra.mxu0 0
    %1676 = vmatprep.subr.bf16.mxu0 0
    %1677 = vmatpush1.bf16.msra.mxu0 0
    %1678 = vmatprep.subr.bf16.mxu0 0
    %1679 = vmatpush1.bf16.msra.mxu0 %v1669
    %1680 = vmatprep.subr.bf16.mxu0 0
    %1681 = vmatpush1.bf16.msra.mxu0 %v1668
    %1682 = vmatprep.subr.bf16.mxu0 0
    %1683 = vmatpush1.bf16.msra.mxu0 %v1667
    %1684 = vmatprep.subr.bf16.mxu0 0
    %1685 = vmatpush1.bf16.msra.mxu0 %v1666
    %1686 = vmatprep.subr.bf16.mxu0 0
    %1687 = vmatpush2.bf16.msra.mxu0 0
    %1688 = vmatprep.subr.bf16.mxu0 0
    %1689 = vmatpush2.bf16.msra.mxu0 0
    %1690 = vmatprep.subr.bf16.mxu0 0
    %1691 = vmatpush2.bf16.msra.mxu0 0
    %1692 = vmatprep.subr.bf16.mxu0 0
    %1693 = vmatpush2.bf16.msra.mxu0 0
    %1694 = vmatprep.subr.bf16.mxu0 0
    %1695 = vmatpush2.bf16.msra.mxu0 0
    %1696 = vmatprep.subr.bf16.mxu0 0
    %1697 = vmatpush2.bf16.msra.mxu0 0
    %1698 = vmatprep.subr.bf16.mxu0 0
    %1699 = vmatpush2.bf16.msra.mxu0 0
    %1700 = vmatprep.subr.bf16.mxu0 0
    %1701 = vmatpush2.bf16.msra.mxu0 0
    %1702 = vmatprep.mubr.bf16.mxu0 0
    %1703 = vmatmul.mubr.bf16.gmra.mxu0 %v435
    %v1704 = vpop.f32.mrf.mxu0
    %v1705 = vadd.f32 %v1630, %v1704
    %v1706 = vpop.f32.mrf.mxu0
    %v1707 = vpop.f32.mrf.mxu0
    %v1708 = vadd.f32 %v1634, %v1707
    %v1709 = vpop.f32.mrf.mxu0
    %1710 = vmatprep.mubr.bf16.mxu0 0
    %1711 = vmatmul.mubr.bf16.gmra.mxu0 %v438
    %v1712 = vpop.f32.mrf.mxu0
    %v1713 = vadd.f32 %v1640, %v1712
    %v1714 = vpop.f32.mrf.mxu0
    %v1715 = vpop.f32.mrf.mxu0
    %v1716 = vadd.f32 %v1644, %v1715
    %v1717 = vpop.f32.mrf.mxu0
    %1718 = vmatprep.mubr.bf16.mxu0 0
    %1719 = vmatmul.mubr.bf16.gmra.mxu0 %v441
    %v1720 = vpop.f32.mrf.mxu0
    %v1721 = vadd.f32 %v1650, %v1720
    %v1722 = vpop.f32.mrf.mxu0
    %v1723 = vpop.f32.mrf.mxu0
    %v1724 = vadd.f32 %v1654, %v1723
    %v1725 = vpop.f32.mrf.mxu0
    %1726 = vmatprep.mubr.bf16.mxu0 0
    %1727 = vmatmul.mubr.bf16.gmra.mxu0 %v444
    %v1728 = vpop.f32.mrf.mxu0
    %v1729 = vadd.f32 %v1660, %v1728
    %v1730 = vpop.f32.mrf.mxu0
    %v1731 = vpop.f32.mrf.mxu0
    %v1732 = vadd.f32 %v1664, %v1731
    %v1733 = vpop.f32.mrf.mxu0
    %1734 = vdwg.mxu0
    %v1735 = vld [vmem:[%s4 + $0x7] sm:$0x1]
    %v1736 = vlaneseq
    %v1737 = vshrl.u32 %v1736, 7
    %v1738 = vsub.s32 0, %v1737
    %v1739 = vrot.slane %v1735, %v1738
    %v1740 = vadd.f32 %v1705, %v1739
    %v1741 = vadd.f32 %v1708, %v1739
    %v1742 = vadd.f32 %v1713, %v1739
    %v1743 = vadd.f32 %v1716, %v1739
    %v1744 = vadd.f32 %v1721, %v1739
    %v1745 = vadd.f32 %v1724, %v1739
    %v1746 = vadd.f32 %v1729, %v1739
    %v1747 = vadd.f32 %v1732, %v1739
    %v1748 = vmax.f32 %v1740, 0.0
    %v1749 = vmax.f32 %v1741, 0.0
    %v1750 = vmax.f32 %v1742, 0.0
    %v1751 = vmax.f32 %v1743, 0.0
    %v1752 = vmax.f32 %v1744, 0.0
    %v1753 = vmax.f32 %v1745, 0.0
    %v1754 = vmax.f32 %v1746, 0.0
    %v1755 = vmax.f32 %v1747, 0.0
    %v1756 = vpack.c.bf16 %v1749, %v1748
    %v1757 = vpack.c.bf16 %v1751, %v1750
    %v1758 = vpack.c.bf16 %v1753, %v1752
    %v1759 = vpack.c.bf16 %v1755, %v1754
    %s1760 = scalar_lea.vmem [#allocation2], 256
    %v1761 = vld [vmem:[%s1760] sm:$0xff]
    %v1762 = vld [vmem:[%s1760 + $0x8] sm:$0xff]
    %v1763 = vld [vmem:[%s1760 + $0x10] sm:$0xff]
    %v1764 = vld [vmem:[%s1760 + $0x18] sm:$0xff]
    %v1769 = vunpack.c.l.b16 %v1761
    %v1770 = vunpack.c.h.b16 %v1761
    %v1771 = vunpack.c.l.b16 %v1762
    %v1772 = vunpack.c.h.b16 %v1762
    %v1773 = vunpack.c.l.b16 %v1763
    %v1774 = vunpack.c.h.b16 %v1763
    %v1775 = vunpack.c.l.b16 %v1764
    %v1776 = vunpack.c.h.b16 %v1764
    %v1777 = vpack.c.b16 %v1771, %v1769
    %v1778 = vpack.c.b16 %v1772, %v1770
    %v1779 = vpack.c.b16 %v1775, %v1773
    %v1780 = vpack.c.b16 %v1776, %v1774
    %v1786 = vsel %vm87, %v1756, 0
    %v1789 = vsel %vm87, %v1757, 0
    %v1792 = vsel %vm87, %v1758, 0
    %v1795 = vsel %vm87, %v1759, 0
    %1797 = vmatprep.subr.bf16.mxu0 0
    %1798 = vmatpush1.bf16.msra.mxu0 0
    %1799 = vmatprep.subr.bf16.mxu0 0
    %1800 = vmatpush1.bf16.msra.mxu0 0
    %1801 = vmatprep.subr.bf16.mxu0 0
    %1802 = vmatpush1.bf16.msra.mxu0 0
    %1803 = vmatprep.subr.bf16.mxu0 0
    %1804 = vmatpush1.bf16.msra.mxu0 0
    %1805 = vmatprep.subr.bf16.mxu0 0
    %1806 = vmatpush1.bf16.msra.mxu0 0
    %1807 = vmatprep.subr.bf16.mxu0 0
    %1808 = vmatpush1.bf16.msra.mxu0 0
    %1809 = vmatprep.subr.bf16.mxu0 %v1780
    %1810 = vmatpush1.bf16.msra.mxu0 %v1779
    %1811 = vmatprep.subr.bf16.mxu0 %v1778
    %1812 = vmatpush1.bf16.msra.mxu0 %v1777
    %1813 = vmatprep.subr.bf16.mxu0 0
    %1814 = vmatpush2.bf16.msra.mxu0 0
    %1815 = vmatprep.subr.bf16.mxu0 0
    %1816 = vmatpush2.bf16.msra.mxu0 0
    %1817 = vmatprep.subr.bf16.mxu0 0
    %1818 = vmatpush2.bf16.msra.mxu0 0
    %1819 = vmatprep.subr.bf16.mxu0 0
    %1820 = vmatpush2.bf16.msra.mxu0 0
    %1821 = vmatprep.subr.bf16.mxu0 0
    %1822 = vmatpush2.bf16.msra.mxu0 0
    %1823 = vmatprep.subr.bf16.mxu0 0
    %1824 = vmatpush2.bf16.msra.mxu0 0
    %1825 = vmatprep.subr.bf16.mxu0 0
    %1826 = vmatpush2.bf16.msra.mxu0 0
    %1827 = vmatprep.subr.bf16.mxu0 0
    %1828 = vmatpush2.bf16.msra.mxu0 0
    %1829 = vmatprep.mubr.bf16.mxu0 0
    %1830 = vmatmul.mubr.bf16.gmra.mxu0 %v1786
    %v1831 = vpop.f32.mrf.mxu0
    %v1832 = vadd.f32 0.0, %v1831
    %v1833 = vpop.f32.mrf.mxu0
    %v1834 = vadd.f32 0.0, %v1833
    %v1835 = vpop.f32.mrf.mxu0
    %v1836 = vadd.f32 0.0, %v1835
    %v1837 = vpop.f32.mrf.mxu0
    %v1838 = vadd.f32 0.0, %v1837
    %1839 = vmatprep.mubr.bf16.mxu0 0
    %1840 = vmatmul.mubr.bf16.gmra.mxu0 %v1789
    %v1841 = vpop.f32.mrf.mxu0
    %v1842 = vadd.f32 0.0, %v1841
    %v1843 = vpop.f32.mrf.mxu0
    %v1844 = vadd.f32 0.0, %v1843
    %v1845 = vpop.f32.mrf.mxu0
    %v1846 = vadd.f32 0.0, %v1845
    %v1847 = vpop.f32.mrf.mxu0
    %v1848 = vadd.f32 0.0, %v1847
    %1849 = vmatprep.mubr.bf16.mxu0 0
    %1850 = vmatmul.mubr.bf16.gmra.mxu0 %v1792
    %v1851 = vpop.f32.mrf.mxu0
    %v1852 = vadd.f32 0.0, %v1851
    %v1853 = vpop.f32.mrf.mxu0
    %v1854 = vadd.f32 0.0, %v1853
    %v1855 = vpop.f32.mrf.mxu0
    %v1856 = vadd.f32 0.0, %v1855
    %v1857 = vpop.f32.mrf.mxu0
    %v1858 = vadd.f32 0.0, %v1857
    %1859 = vmatprep.mubr.bf16.mxu0 0
    %1860 = vmatmul.mubr.bf16.gmra.mxu0 %v1795
    %v1861 = vpop.f32.mrf.mxu0
    %v1862 = vadd.f32 0.0, %v1861
    %v1863 = vpop.f32.mrf.mxu0
    %v1864 = vadd.f32 0.0, %v1863
    %v1865 = vpop.f32.mrf.mxu0
    %v1866 = vadd.f32 0.0, %v1865
    %v1867 = vpop.f32.mrf.mxu0
    %v1868 = vadd.f32 0.0, %v1867
    %1869 = vdwg.mxu0
    %v1870 = vpack.c.bf16 %v1836, %v1832
    %v1871 = vpack.c.bf16 %v1846, %v1842
    %v1872 = vpack.c.bf16 %v1856, %v1852
    %v1873 = vpack.c.bf16 %v1866, %v1862
    %1874 = vmatprep.subr.bf16.mxu0 0
    %1875 = vmatpush1.bf16.msra.mxu0 0
    %1876 = vmatprep.subr.bf16.mxu0 0
    %1877 = vmatpush1.bf16.msra.mxu0 0
    %1878 = vmatprep.subr.bf16.mxu0 0
    %1879 = vmatpush1.bf16.msra.mxu0 0
    %1880 = vmatprep.subr.bf16.mxu0 0
    %1881 = vmatpush1.bf16.msra.mxu0 0
    %1882 = vmatprep.subr.bf16.mxu0 0
    %1883 = vmatpush1.bf16.msra.mxu0 %v1873
    %1884 = vmatprep.subr.bf16.mxu0 0
    %1885 = vmatpush1.bf16.msra.mxu0 %v1872
    %1886 = vmatprep.subr.bf16.mxu0 0
    %1887 = vmatpush1.bf16.msra.mxu0 %v1871
    %1888 = vmatprep.subr.bf16.mxu0 0
    %1889 = vmatpush1.bf16.msra.mxu0 %v1870
    %1890 = vmatprep.subr.bf16.mxu0 0
    %1891 = vmatpush2.bf16.msra.mxu0 0
    %1892 = vmatprep.subr.bf16.mxu0 0
    %1893 = vmatpush2.bf16.msra.mxu0 0
    %1894 = vmatprep.subr.bf16.mxu0 0
    %1895 = vmatpush2.bf16.msra.mxu0 0
    %1896 = vmatprep.subr.bf16.mxu0 0
    %1897 = vmatpush2.bf16.msra.mxu0 0
    %1898 = vmatprep.subr.bf16.mxu0 0
    %1899 = vmatpush2.bf16.msra.mxu0 0
    %1900 = vmatprep.subr.bf16.mxu0 0
    %1901 = vmatpush2.bf16.msra.mxu0 0
    %1902 = vmatprep.subr.bf16.mxu0 0
    %1903 = vmatpush2.bf16.msra.mxu0 0
    %1904 = vmatprep.subr.bf16.mxu0 0
    %1905 = vmatpush2.bf16.msra.mxu0 0
    %1906 = vmatprep.mubr.bf16.mxu0 0
    %1907 = vmatmul.mubr.bf16.gmra.mxu0 %v199
    %v1908 = vpop.f32.mrf.mxu0
    %v1909 = vadd.f32 %v1834, %v1908
    %v1910 = vpop.f32.mrf.mxu0
    %v1911 = vpop.f32.mrf.mxu0
    %v1912 = vadd.f32 %v1838, %v1911
    %v1913 = vpop.f32.mrf.mxu0
    %1914 = vmatprep.mubr.bf16.mxu0 0
    %1915 = vmatmul.mubr.bf16.gmra.mxu0 %v202
    %v1916 = vpop.f32.mrf.mxu0
    %v1917 = vadd.f32 %v1844, %v1916
    %v1918 = vpop.f32.mrf.mxu0
    %v1919 = vpop.f32.mrf.mxu0
    %v1920 = vadd.f32 %v1848, %v1919
    %v1921 = vpop.f32.mrf.mxu0
    %1922 = vmatprep.mubr.bf16.mxu0 0
    %1923 = vmatmul.mubr.bf16.gmra.mxu0 %v205
    %v1924 = vpop.f32.mrf.mxu0
    %v1925 = vadd.f32 %v1854, %v1924
    %v1926 = vpop.f32.mrf.mxu0
    %v1927 = vpop.f32.mrf.mxu0
    %v1928 = vadd.f32 %v1858, %v1927
    %v1929 = vpop.f32.mrf.mxu0
    %1930 = vmatprep.mubr.bf16.mxu0 0
    %1931 = vmatmul.mubr.bf16.gmra.mxu0 %v208
    %v1932 = vpop.f32.mrf.mxu0
    %v1933 = vadd.f32 %v1864, %v1932
    %v1934 = vpop.f32.mrf.mxu0
    %v1935 = vpop.f32.mrf.mxu0
    %v1936 = vadd.f32 %v1868, %v1935
    %v1937 = vpop.f32.mrf.mxu0
    %1938 = vdwg.mxu0
    %v1939 = vld [vmem:[%s4 + $0x8] sm:$0x1]
    %v1940 = vlaneseq
    %v1941 = vshrl.u32 %v1940, 7
    %v1942 = vsub.s32 0, %v1941
    %v1943 = vrot.slane %v1939, %v1942
    %v1944 = vadd.f32 %v1909, %v1943
    %v1945 = vadd.f32 %v1912, %v1943
    %v1946 = vadd.f32 %v1917, %v1943
    %v1947 = vadd.f32 %v1920, %v1943
    %v1948 = vadd.f32 %v1925, %v1943
    %v1949 = vadd.f32 %v1928, %v1943
    %v1950 = vadd.f32 %v1933, %v1943
    %v1951 = vadd.f32 %v1936, %v1943
    %v1952 = vmax.f32 %v1944, 0.0
    %v1953 = vmax.f32 %v1945, 0.0
    %v1954 = vmax.f32 %v1946, 0.0
    %v1955 = vmax.f32 %v1947, 0.0
    %v1956 = vmax.f32 %v1948, 0.0
    %v1957 = vmax.f32 %v1949, 0.0
    %v1958 = vmax.f32 %v1950, 0.0
    %v1959 = vmax.f32 %v1951, 0.0
    %v1960 = vpack.c.bf16 %v1953, %v1952
    %v1961 = vpack.c.bf16 %v1955, %v1954
    %v1962 = vpack.c.bf16 %v1957, %v1956
    %v1963 = vpack.c.bf16 %v1959, %v1958
    %s1964 = scalar_lea.vmem [#allocation2], 288
    %v1965 = vld [vmem:[%s1964] sm:$0xff]
    %v1966 = vld [vmem:[%s1964 + $0x8] sm:$0xff]
    %v1967 = vld [vmem:[%s1964 + $0x10] sm:$0xff]
    %v1968 = vld [vmem:[%s1964 + $0x18] sm:$0xff]
    %v1973 = vunpack.c.l.b16 %v1965
    %v1974 = vunpack.c.h.b16 %v1965
    %v1975 = vunpack.c.l.b16 %v1966
    %v1976 = vunpack.c.h.b16 %v1966
    %v1977 = vunpack.c.l.b16 %v1967
    %v1978 = vunpack.c.h.b16 %v1967
    %v1979 = vunpack.c.l.b16 %v1968
    %v1980 = vunpack.c.h.b16 %v1968
    %v1981 = vpack.c.b16 %v1975, %v1973
    %v1982 = vpack.c.b16 %v1976, %v1974
    %v1983 = vpack.c.b16 %v1979, %v1977
    %v1984 = vpack.c.b16 %v1980, %v1978
    %v1990 = vsel %vm87, %v1960, 0
    %v1993 = vsel %vm87, %v1961, 0
    %v1996 = vsel %vm87, %v1962, 0
    %v1999 = vsel %vm87, %v1963, 0
    %2001 = vmatprep.subr.bf16.mxu0 0
    %2002 = vmatpush1.bf16.msra.mxu0 0
    %2003 = vmatprep.subr.bf16.mxu0 0
    %2004 = vmatpush1.bf16.msra.mxu0 0
    %2005 = vmatprep.subr.bf16.mxu0 0
    %2006 = vmatpush1.bf16.msra.mxu0 0
    %2007 = vmatprep.subr.bf16.mxu0 0
    %2008 = vmatpush1.bf16.msra.mxu0 0
    %2009 = vmatprep.subr.bf16.mxu0 0
    %2010 = vmatpush1.bf16.msra.mxu0 0
    %2011 = vmatprep.subr.bf16.mxu0 0
    %2012 = vmatpush1.bf16.msra.mxu0 0
    %2013 = vmatprep.subr.bf16.mxu0 %v1984
    %2014 = vmatpush1.bf16.msra.mxu0 %v1983
    %2015 = vmatprep.subr.bf16.mxu0 %v1982
    %2016 = vmatpush1.bf16.msra.mxu0 %v1981
    %2017 = vmatprep.subr.bf16.mxu0 0
    %2018 = vmatpush2.bf16.msra.mxu0 0
    %2019 = vmatprep.subr.bf16.mxu0 0
    %2020 = vmatpush2.bf16.msra.mxu0 0
    %2021 = vmatprep.subr.bf16.mxu0 0
    %2022 = vmatpush2.bf16.msra.mxu0 0
    %2023 = vmatprep.subr.bf16.mxu0 0
    %2024 = vmatpush2.bf16.msra.mxu0 0
    %2025 = vmatprep.subr.bf16.mxu0 0
    %2026 = vmatpush2.bf16.msra.mxu0 0
    %2027 = vmatprep.subr.bf16.mxu0 0
    %2028 = vmatpush2.bf16.msra.mxu0 0
    %2029 = vmatprep.subr.bf16.mxu0 0
    %2030 = vmatpush2.bf16.msra.mxu0 0
    %2031 = vmatprep.subr.bf16.mxu0 0
    %2032 = vmatpush2.bf16.msra.mxu0 0
    %2033 = vmatprep.mubr.bf16.mxu0 0
    %2034 = vmatmul.mubr.bf16.gmra.mxu0 %v1990
    %v2035 = vpop.f32.mrf.mxu0
    %v2036 = vadd.f32 0.0, %v2035
    %v2037 = vpop.f32.mrf.mxu0
    %v2038 = vadd.f32 0.0, %v2037
    %v2039 = vpop.f32.mrf.mxu0
    %v2040 = vadd.f32 0.0, %v2039
    %v2041 = vpop.f32.mrf.mxu0
    %v2042 = vadd.f32 0.0, %v2041
    %2043 = vmatprep.mubr.bf16.mxu0 0
    %2044 = vmatmul.mubr.bf16.gmra.mxu0 %v1993
    %v2045 = vpop.f32.mrf.mxu0
    %v2046 = vadd.f32 0.0, %v2045
    %v2047 = vpop.f32.mrf.mxu0
    %v2048 = vadd.f32 0.0, %v2047
    %v2049 = vpop.f32.mrf.mxu0
    %v2050 = vadd.f32 0.0, %v2049
    %v2051 = vpop.f32.mrf.mxu0
    %v2052 = vadd.f32 0.0, %v2051
    %2053 = vmatprep.mubr.bf16.mxu0 0
    %2054 = vmatmul.mubr.bf16.gmra.mxu0 %v1996
    %v2055 = vpop.f32.mrf.mxu0
    %v2056 = vadd.f32 0.0, %v2055
    %v2057 = vpop.f32.mrf.mxu0
    %v2058 = vadd.f32 0.0, %v2057
    %v2059 = vpop.f32.mrf.mxu0
    %v2060 = vadd.f32 0.0, %v2059
    %v2061 = vpop.f32.mrf.mxu0
    %v2062 = vadd.f32 0.0, %v2061
    %2063 = vmatprep.mubr.bf16.mxu0 0
    %2064 = vmatmul.mubr.bf16.gmra.mxu0 %v1999
    %v2065 = vpop.f32.mrf.mxu0
    %v2066 = vadd.f32 0.0, %v2065
    %v2067 = vpop.f32.mrf.mxu0
    %v2068 = vadd.f32 0.0, %v2067
    %v2069 = vpop.f32.mrf.mxu0
    %v2070 = vadd.f32 0.0, %v2069
    %v2071 = vpop.f32.mrf.mxu0
    %v2072 = vadd.f32 0.0, %v2071
    %2073 = vdwg.mxu0
    %v2074 = vpack.c.bf16 %v2040, %v2036
    %v2075 = vpack.c.bf16 %v2050, %v2046
    %v2076 = vpack.c.bf16 %v2060, %v2056
    %v2077 = vpack.c.bf16 %v2070, %v2066
    %2078 = vmatprep.subr.bf16.mxu0 0
    %2079 = vmatpush1.bf16.msra.mxu0 0
    %2080 = vmatprep.subr.bf16.mxu0 0
    %2081 = vmatpush1.bf16.msra.mxu0 0
    %2082 = vmatprep.subr.bf16.mxu0 0
    %2083 = vmatpush1.bf16.msra.mxu0 0
    %2084 = vmatprep.subr.bf16.mxu0 0
    %2085 = vmatpush1.bf16.msra.mxu0 0
    %2086 = vmatprep.subr.bf16.mxu0 0
    %2087 = vmatpush1.bf16.msra.mxu0 %v2077
    %2088 = vmatprep.subr.bf16.mxu0 0
    %2089 = vmatpush1.bf16.msra.mxu0 %v2076
    %2090 = vmatprep.subr.bf16.mxu0 0
    %2091 = vmatpush1.bf16.msra.mxu0 %v2075
    %2092 = vmatprep.subr.bf16.mxu0 0
    %2093 = vmatpush1.bf16.msra.mxu0 %v2074
    %2094 = vmatprep.subr.bf16.mxu0 0
    %2095 = vmatpush2.bf16.msra.mxu0 0
    %2096 = vmatprep.subr.bf16.mxu0 0
    %2097 = vmatpush2.bf16.msra.mxu0 0
    %2098 = vmatprep.subr.bf16.mxu0 0
    %2099 = vmatpush2.bf16.msra.mxu0 0
    %2100 = vmatprep.subr.bf16.mxu0 0
    %2101 = vmatpush2.bf16.msra.mxu0 0
    %2102 = vmatprep.subr.bf16.mxu0 0
    %2103 = vmatpush2.bf16.msra.mxu0 0
    %2104 = vmatprep.subr.bf16.mxu0 0
    %2105 = vmatpush2.bf16.msra.mxu0 0
    %2106 = vmatprep.subr.bf16.mxu0 0
    %2107 = vmatpush2.bf16.msra.mxu0 0
    %2108 = vmatprep.subr.bf16.mxu0 0
    %2109 = vmatpush2.bf16.msra.mxu0 0
    %2110 = vmatprep.mubr.bf16.mxu0 0
    %2111 = vmatmul.mubr.bf16.gmra.mxu0 %v435
    %v2112 = vpop.f32.mrf.mxu0
    %v2113 = vadd.f32 %v2038, %v2112
    %v2114 = vpop.f32.mrf.mxu0
    %v2115 = vpop.f32.mrf.mxu0
    %v2116 = vadd.f32 %v2042, %v2115
    %v2117 = vpop.f32.mrf.mxu0
    %2118 = vmatprep.mubr.bf16.mxu0 0
    %2119 = vmatmul.mubr.bf16.gmra.mxu0 %v438
    %v2120 = vpop.f32.mrf.mxu0
    %v2121 = vadd.f32 %v2048, %v2120
    %v2122 = vpop.f32.mrf.mxu0
    %v2123 = vpop.f32.mrf.mxu0
    %v2124 = vadd.f32 %v2052, %v2123
    %v2125 = vpop.f32.mrf.mxu0
    %2126 = vmatprep.mubr.bf16.mxu0 0
    %2127 = vmatmul.mubr.bf16.gmra.mxu0 %v441
    %v2128 = vpop.f32.mrf.mxu0
    %v2129 = vadd.f32 %v2058, %v2128
    %v2130 = vpop.f32.mrf.mxu0
    %v2131 = vpop.f32.mrf.mxu0
    %v2132 = vadd.f32 %v2062, %v2131
    %v2133 = vpop.f32.mrf.mxu0
    %2134 = vmatprep.mubr.bf16.mxu0 0
    %2135 = vmatmul.mubr.bf16.gmra.mxu0 %v444
    %v2136 = vpop.f32.mrf.mxu0
    %v2137 = vadd.f32 %v2068, %v2136
    %v2138 = vpop.f32.mrf.mxu0
    %v2139 = vpop.f32.mrf.mxu0
    %v2140 = vadd.f32 %v2072, %v2139
    %v2141 = vpop.f32.mrf.mxu0
    %2142 = vdwg.mxu0
    %v2143 = vld [vmem:[%s4 + $0x9] sm:$0x1]
    %v2144 = vlaneseq
    %v2145 = vshrl.u32 %v2144, 7
    %v2146 = vsub.s32 0, %v2145
    %v2147 = vrot.slane %v2143, %v2146
    %v2148 = vadd.f32 %v2113, %v2147
    %v2149 = vadd.f32 %v2116, %v2147
    %v2150 = vadd.f32 %v2121, %v2147
    %v2151 = vadd.f32 %v2124, %v2147
    %v2152 = vadd.f32 %v2129, %v2147
    %v2153 = vadd.f32 %v2132, %v2147
    %v2154 = vadd.f32 %v2137, %v2147
    %v2155 = vadd.f32 %v2140, %v2147
    %2156 = vst [vmem:[%s5] sm:$0xff] %v2148
    %2157 = vst [vmem:[%s5 + $0x8] sm:$0xff] %v2149
    %2158 = vst [vmem:[%s5 + $0x10] sm:$0xff] %v2150
    %2159 = vst [vmem:[%s5 + $0x18] sm:$0xff] %v2151
    %2160 = vst [vmem:[%s5 + $0x20] sm:$0xff] %v2152
    %2161 = vst [vmem:[%s5 + $0x28] sm:$0xff] %v2153
    %2162 = vst [vmem:[%s5 + $0x30] sm:$0xff] %v2154
    %2163 = vst [vmem:[%s5 + $0x38] sm:$0xff] %v2155
    // Predicated region
    $region26: #{gcn_layer_sage_forward.1} parent=1 // pred_check
      _
    $region27: #{gcn_layer_sage_forward.1} parent=1 // pred_check_branch
      %2165 = sbr.rel (0) target = $region29
    $region28: #{gcn_layer_sage_forward.1} parent=1 // pred_region
      _
    $region29: #{gcn_layer_sage_forward.1} parent=1 // pred_fallthru
      _
    // Predicated region
    $region30: #{gcn_layer_sage_forward.1} parent=1 // pred_check
      _
    $region31: #{gcn_layer_sage_forward.1} parent=1 // pred_check_branch
      %2167 = sbr.rel (0) target = $region33
    $region32: #{gcn_layer_sage_forward.1} parent=1 // pred_region
      _
    $region33: #{gcn_layer_sage_forward.1} parent=1 // pred_fallthru
      _
    %2168 = vsyncpa [#allocation3], 1

</llo_original>
